<compile_context>
chip_gen: v6e
topology: v6e:2x2x1
jax: 0.10.0
libtpu: 0.0.40
codegen_flags: <defaults>
</compile_context>

<pallas_src>
import functools

import jax
import jax.numpy as jnp
from jax.experimental import pallas as pl
from jax.experimental.pallas import tpu as pltpu


_LN_EPS = 1e-5


def _gelu(x):
    # TODO(synk): PyTorch nn.GELU defaults to the exact erf form; erf lowering is
    # not guaranteed in Mosaic, so the tanh approximation (max abs err ~1e-3) is
    # used here AND in the reference so the self-test compares like-for-like.
    c = jnp.float32(0.7978845608028654)  # sqrt(2/pi)
    return 0.5 * x * (1.0 + jnp.tanh(c * (x + 0.044715 * (x * x * x))))


def _bi_attn_mlp_kernel(x_ref, w1_ref, b1_ref, w2_ref, b2_ref,
                        gamma_ref, beta_ref, wg_ref, bg_ref, wl_ref, bl_ref,
                        wc_ref, bc_ref, wsl_ref, wsg_ref, bs_ref, out_ref,
                        *, compute_dtype):
    """One grid step == one (batch, W-tile) block of shape (N, Wt, C)."""
    n_tok, n_grp, c_dim = x_ref.shape
    m = n_tok * n_grp
    cdt = compute_dtype

    # Flatten the W groups into the matmul M dimension (layout-free when Wt%8==0).
    x = x_ref[...].reshape(m, c_dim)

    # --- MLP: fc1 -> GELU -> fc2, one MXU call each with M = N*Wt ---
    h = _gelu(jnp.dot(x.astype(cdt), w1_ref[...].astype(cdt),
                      preferred_element_type=jnp.float32) + b1_ref[...])
    y = jnp.dot(h.astype(cdt), w2_ref[...].astype(cdt),
                preferred_element_type=jnp.float32) + b2_ref[...]          # (M, C)

    # --- BiAttn: LayerNorm (f32 stats) ---
    mu = jnp.mean(y, axis=-1, keepdims=True)
    var = jnp.mean((y - mu) * (y - mu), axis=-1, keepdims=True)
    xn = (y - mu) * jax.lax.rsqrt(var + _LN_EPS) * gamma_ref[...] + beta_ref[...]

    # Global branch: mean over tokens per group -> (Wt, C), then one small matmul.
    x_global = jnp.mean(xn.reshape(n_tok, n_grp, c_dim), axis=0)           # (Wt, C)
    g_act = _gelu(jnp.dot(x_global.astype(cdt), wg_ref[...].astype(cdt),
                          preferred_element_type=jnp.float32) + bg_ref[...])  # (Wt, R)

    # Channel attention: once per group, broadcast over tokens on the VPU.
    c_attn = jax.nn.sigmoid(
        jnp.dot(g_act.astype(cdt), wc_ref[...].astype(cdt),
                preferred_element_type=jnp.float32) + bc_ref[...])         # (Wt, C)

    # Local branch: (M, R).
    l_act = _gelu(jnp.dot(xn.astype(cdt), wl_ref[...].astype(cdt),
                          preferred_element_type=jnp.float32) + bl_ref[...])

    # Spatial attention: Linear(concat([local, global]), 2R -> 1) split into two
    # row-dots (VPU mul + lane reduce); concat / global expand never materialized.
    s_local = jnp.sum(l_act.reshape(n_tok, n_grp, -1) * wsl_ref[...],
                      axis=-1, keepdims=True)                              # (N, Wt, 1)
    s_global = jnp.sum(g_act * wsg_ref[...], axis=-1, keepdims=True)       # (Wt, 1)
    s_attn = jax.nn.sigmoid(s_local + s_global[None] + bs_ref[...])        # (N, Wt, 1)

    out_ref[...] = (y.reshape(n_tok, n_grp, c_dim)
                    * c_attn[None] * s_attn).astype(out_ref.dtype)


_PARAM_ORDER = ("w1", "b1", "w2", "b2", "gamma", "beta", "wg", "bg",
                "wl", "bl", "wc", "bc", "wsl", "wsg", "bs")


def _pick_group_tile(W, N, C, itemsize, budget_bytes=2 << 20):
    """Largest divisor of W that is a multiple of 8 (layout-free flatten) and keeps
    the per-step x block within the VMEM budget; fall back to full W."""
    divisors = [w for w in range(8, W + 1, 8) if W % w == 0]
    if not divisors:
        return W
    fitting = [w for w in divisors if N * w * C * itemsize <= budget_bytes]
    return max(fitting) if fitting else min(divisors)


def bi_attn_mlp(x, params, *, compute_dtype=jnp.float32, group_tile=None):
    """x: (B, N, W, C) float32 — the 4-D layout the PyTorch forward implies."""
    B, N, W, C = x.shape
    weights = [params[k] for k in _PARAM_ORDER]

    Wt = group_tile if group_tile is not None else _pick_group_tile(
        W, N, C, x.dtype.itemsize)
    assert W % Wt == 0, (W, Wt)
    n_w_blocks = W // Wt

    kernel = functools.partial(_bi_attn_mlp_kernel, compute_dtype=compute_dtype)

    def _resident(a):
        nd = a.ndim
        return pl.BlockSpec(a.shape, lambda b, w, _nd=nd: (0,) * _nd)

    Hf = params["w1"].shape[1]
    R = params["wg"].shape[1]
    m_total = B * N * W
    flops = 2 * m_total * (C * Hf + Hf * C + C * R) + 2 * B * W * (C * R + R * C)
    transcendentals = m_total * (Hf + R + 1) + B * W * (R + C)
    weight_bytes = sum(int(w.size) * w.dtype.itemsize for w in weights)
    bytes_accessed = 2 * int(x.size) * x.dtype.itemsize + weight_bytes
    cost = pl.CostEstimate(flops=int(flops),
                           transcendentals=int(transcendentals),
                           bytes_accessed=int(bytes_accessed))

    block_bytes = N * Wt * C * x.dtype.itemsize
    # Double-buffered in+out blocks + intermediates + resident weights, with margin;
    # capped at 64 MiB so it stays within v7x physical VMEM.
    vmem_limit = int(min(max(8 * block_bytes + 4 * weight_bytes + (4 << 20),
                             16 << 20), 64 << 20))

    return pl.pallas_call(
        kernel,
        grid=(B, n_w_blocks),
        in_specs=[pl.BlockSpec((None, N, Wt, C), lambda b, w: (b, 0, w, 0))]
                 + [_resident(a) for a in weights],
        out_specs=pl.BlockSpec((None, N, Wt, C), lambda b, w: (b, 0, w, 0)),
        out_shape=jax.ShapeDtypeStruct((B, N, W, C), x.dtype),
        compiler_params=pltpu.CompilerParams(
            dimension_semantics=("parallel", "parallel"),
            vmem_limit_bytes=vmem_limit),
        cost_estimate=cost,
    )(x, *weights)


def init_params(key, in_features, hidden_features, act_ratio=0.25):
    C, H = in_features, hidden_features
    R = int(C * act_ratio)
    ks = jax.random.split(key, 8)

    def linear(k, fan_in, fan_out):
        kw, kb = jax.random.split(k)
        bound = float(fan_in) ** -0.5
        w = jax.random.uniform(kw, (fan_in, fan_out), jnp.float32, -bound, bound)
        b = jax.random.uniform(kb, (1, fan_out), jnp.float32, -bound, bound)
        return w, b

    w1, b1 = linear(ks[0], C, H)
    w2, b2 = linear(ks[1], H, C)
    gamma = 1.0 + 0.1 * jax.random.normal(ks[2], (1, C), jnp.float32)
    beta = 0.1 * jax.random.normal(ks[3], (1, C), jnp.float32)
    wg, bg = linear(ks[4], C, R)
    wl, bl = linear(ks[5], C, R)
    wc, bc = linear(ks[6], R, C)
    ws, bs = linear(ks[7], 2 * R, 1)           # spatial_select: (2R, 1), (1, 1)
    wsl = ws[:R].T                              # (1, R) — acts on the local half
    wsg = ws[R:].T                              # (1, R) — acts on the global half
    return dict(w1=w1, b1=b1, w2=w2, b2=b2, gamma=gamma, beta=beta,
                wg=wg, bg=bg, wl=wl, bl=bl, wc=wc, bc=bc,
                wsl=wsl, wsg=wsg, bs=bs)


def bi_attn_mlp_reference(x, p):
    """Literal transcription of BiAttnMlp.forward / BiAttn.forward (drop == Identity)."""
    h = _gelu(x @ p["w1"] + p["b1"][0])
    y = h @ p["w2"] + p["b2"][0]                               # fc2 out == ori_x
    mu = y.mean(-1, keepdims=True)
    var = ((y - mu) ** 2).mean(-1, keepdims=True)
    xn = (y - mu) * jax.lax.rsqrt(var + _LN_EPS) * p["gamma"][0] + p["beta"][0]
    x_global = xn.mean(1, keepdims=True)                       # (B, 1, W, C)
    x_global = _gelu(x_global @ p["wg"] + p["bg"][0])          # (B, 1, W, R)
    x_local = _gelu(xn @ p["wl"] + p["bl"][0])                 # (B, N, W, R)
    c_attn = jax.nn.sigmoid(x_global @ p["wc"] + p["bc"][0])   # (B, 1, W, C)
    expand_global = jnp.broadcast_to(x_global, x_local.shape)
    fusion = jnp.concatenate([x_local, expand_global], axis=-1)
    ws = jnp.concatenate([p["wsl"][0], p["wsg"][0]])[:, None]  # (2R, 1)
    s_attn = jax.nn.sigmoid(fusion @ ws + p["bs"][0, 0])       # (B, N, W, 1)
    return y * (c_attn * s_attn)


if __name__ == "__main__":
    key = jax.random.PRNGKey(0)
    # batch, tokens (pooled dim 1), spatial, channels, hidden
    B, N, W, C, H = 2, 8, 16, 32, 64
    kx, kp = jax.random.split(key)
    x = jax.random.normal(kx, (B, N, W, C), jnp.float32)
    params = init_params(kp, in_features=C, hidden_features=H)

    with jax.default_matmul_precision("highest"):
        ref = bi_attn_mlp_reference(x, params)

    # f32 MXU path; split W into two tiles to exercise the 2-D (B, W/Wt) grid.
    out = jax.jit(functools.partial(bi_attn_mlp, group_tile=8))(x, params)
    jax.block_until_ready(out)
    assert out.shape == ref.shape, (out.shape, ref.shape)
    max_err = float(jnp.max(jnp.abs(out - ref)))
    assert jnp.allclose(out, ref, rtol=2e-3, atol=2e-3), f"f32 max abs err {max_err}"

    # bf16-operand MXU path (v6e/v7x fast path): f32 accumulation + f32 elementwise.
    out_bf16 = jax.jit(
        functools.partial(bi_attn_mlp, compute_dtype=jnp.bfloat16))(x, params)
    jax.block_until_ready(out_bf16)
    max_err_bf16 = float(jnp.max(jnp.abs(out_bf16 - ref)))
    assert jnp.isfinite(max_err_bf16) and max_err_bf16 < 8e-2, (
        f"bf16 max abs err {max_err_bf16}")

    print("KERNEL_OK")
</pallas_src>

<mosaic_0001>
module attributes {stable_mosaic.version = 11 : i64} {
  func.func @_bi_attn_mlp_kernel(%arg0: i32, %arg1: i32, %arg2: memref<1x8x8x32xf32, #tpu.memory_space<vmem>>, %arg3: memref<32x64xf32, #tpu.memory_space<vmem>>, %arg4: memref<1x64xf32, #tpu.memory_space<vmem>>, %arg5: memref<64x32xf32, #tpu.memory_space<vmem>>, %arg6: memref<1x32xf32, #tpu.memory_space<vmem>>, %arg7: memref<1x32xf32, #tpu.memory_space<vmem>>, %arg8: memref<1x32xf32, #tpu.memory_space<vmem>>, %arg9: memref<32x8xf32, #tpu.memory_space<vmem>>, %arg10: memref<1x8xf32, #tpu.memory_space<vmem>>, %arg11: memref<32x8xf32, #tpu.memory_space<vmem>>, %arg12: memref<1x8xf32, #tpu.memory_space<vmem>>, %arg13: memref<8x32xf32, #tpu.memory_space<vmem>>, %arg14: memref<1x32xf32, #tpu.memory_space<vmem>>, %arg15: memref<1x8xf32, #tpu.memory_space<vmem>>, %arg16: memref<1x8xf32, #tpu.memory_space<vmem>>, %arg17: memref<1x1xf32, #tpu.memory_space<vmem>>, %arg18: memref<1x8x8x32xf32, #tpu.memory_space<vmem>>) attributes {dimension_semantics = [#tpu.dimension_semantics<parallel>, #tpu.dimension_semantics<parallel>], iteration_bounds = array<i64: 2, 2>, scalar_prefetch = 0 : i64, scratch_operands = 0 : i64, tpu.core_type = #tpu.core_type<tc>, window_params = [{transform_indices = @transform_0, window_bounds = array<i64: 1, 8, 8, 32>}, {pipeline_mode = #tpu.pipeline_mode<synchronous>, transform_indices = @transform_1, window_bounds = array<i64: 32, 64>}, {pipeline_mode = #tpu.pipeline_mode<synchronous>, transform_indices = @transform_2, window_bounds = array<i64: 1, 64>}, {pipeline_mode = #tpu.pipeline_mode<synchronous>, transform_indices = @transform_3, window_bounds = array<i64: 64, 32>}, {pipeline_mode = #tpu.pipeline_mode<synchronous>, transform_indices = @transform_4, window_bounds = array<i64: 1, 32>}, {pipeline_mode = #tpu.pipeline_mode<synchronous>, transform_indices = @transform_5, window_bounds = array<i64: 1, 32>}, {pipeline_mode = #tpu.pipeline_mode<synchronous>, transform_indices = @transform_6, window_bounds = array<i64: 1, 32>}, {pipeline_mode = #tpu.pipeline_mode<synchronous>, transform_indices = @transform_7, window_bounds = array<i64: 32, 8>}, {pipeline_mode = #tpu.pipeline_mode<synchronous>, transform_indices = @transform_8, window_bounds = array<i64: 1, 8>}, {pipeline_mode = #tpu.pipeline_mode<synchronous>, transform_indices = @transform_9, window_bounds = array<i64: 32, 8>}, {pipeline_mode = #tpu.pipeline_mode<synchronous>, transform_indices = @transform_10, window_bounds = array<i64: 1, 8>}, {pipeline_mode = #tpu.pipeline_mode<synchronous>, transform_indices = @transform_11, window_bounds = array<i64: 8, 32>}, {pipeline_mode = #tpu.pipeline_mode<synchronous>, transform_indices = @transform_12, window_bounds = array<i64: 1, 32>}, {pipeline_mode = #tpu.pipeline_mode<synchronous>, transform_indices = @transform_13, window_bounds = array<i64: 1, 8>}, {pipeline_mode = #tpu.pipeline_mode<synchronous>, transform_indices = @transform_14, window_bounds = array<i64: 1, 8>}, {pipeline_mode = #tpu.pipeline_mode<synchronous>, transform_indices = @transform_15, window_bounds = array<i64: 1, 1>}, {transform_indices = @transform_16, window_bounds = array<i64: 1, 8, 8, 32>}]} {
    %c0 = arith.constant 0 : index
    %c0_0 = arith.constant 0 : index
    %c0_1 = arith.constant 0 : index
    %c0_2 = arith.constant 0 : index
    %0 = vector.load %arg2[%c0, %c0_0, %c0_1, %c0_2] : memref<1x8x8x32xf32, #tpu.memory_space<vmem>>, vector<1x8x8x32xf32>
    %1 = vector.shape_cast %0 : vector<1x8x8x32xf32> to vector<8x8x32xf32>
    %2 = vector.shape_cast %1 : vector<8x8x32xf32> to vector<64x32xf32>
    %c0_3 = arith.constant 0 : index
    %c0_4 = arith.constant 0 : index
    %3 = vector.load %arg3[%c0_3, %c0_4] : memref<32x64xf32, #tpu.memory_space<vmem>>, vector<32x64xf32>
    %cst = arith.constant dense<0.000000e+00> : vector<64x64xf32>
    %4 = tpu.matmul %2, %3, %cst {dimension_numbers = #tpu.dot_dimension_numbers<[1], [0], [0], [1], [0, 0, 1, 1], [], []>} : vector<64x32xf32>, vector<32x64xf32>, vector<64x64xf32> -> vector<64x64xf32>
    %c0_5 = arith.constant 0 : index
    %c0_6 = arith.constant 0 : index
    %5 = vector.load %arg4[%c0_5, %c0_6] : memref<1x64xf32, #tpu.memory_space<vmem>>, vector<1x64xf32>
    %6 = vector.broadcast %5 : vector<1x64xf32> to vector<64x64xf32>
    %7 = arith.addf %4, %6 : vector<64x64xf32>
    %cst_7 = arith.constant 5.000000e-01 : f32
    %8 = vector.broadcast %cst_7 : f32 to vector<64x64xf32>
    %9 = arith.mulf %8, %7 : vector<64x64xf32>
    %10 = arith.mulf %7, %7 : vector<64x64xf32>
    %11 = arith.mulf %10, %7 : vector<64x64xf32>
    %cst_8 = arith.constant 4.471500e-02 : f32
    %12 = vector.broadcast %cst_8 : f32 to vector<64x64xf32>
    %13 = arith.mulf %12, %11 : vector<64x64xf32>
    %14 = arith.addf %7, %13 : vector<64x64xf32>
    %cst_9 = arith.constant 0.797884583 : f32
    %15 = vector.broadcast %cst_9 : f32 to vector<64x64xf32>
    %16 = arith.mulf %15, %14 : vector<64x64xf32>
    %17 = math.tanh %16 : vector<64x64xf32>
    %cst_10 = arith.constant 1.000000e+00 : f32
    %18 = vector.broadcast %cst_10 : f32 to vector<64x64xf32>
    %19 = arith.addf %18, %17 : vector<64x64xf32>
    %20 = arith.mulf %9, %19 : vector<64x64xf32>
    %c0_11 = arith.constant 0 : index
    %c0_12 = arith.constant 0 : index
    %21 = vector.load %arg5[%c0_11, %c0_12] : memref<64x32xf32, #tpu.memory_space<vmem>>, vector<64x32xf32>
    %cst_13 = arith.constant dense<0.000000e+00> : vector<64x32xf32>
    %22 = tpu.matmul %20, %21, %cst_13 {dimension_numbers = #tpu.dot_dimension_numbers<[1], [0], [0], [1], [0, 0, 1, 1], [], []>} : vector<64x64xf32>, vector<64x32xf32>, vector<64x32xf32> -> vector<64x32xf32>
    %c0_14 = arith.constant 0 : index
    %c0_15 = arith.constant 0 : index
    %23 = vector.load %arg6[%c0_14, %c0_15] : memref<1x32xf32, #tpu.memory_space<vmem>>, vector<1x32xf32>
    %24 = vector.broadcast %23 : vector<1x32xf32> to vector<64x32xf32>
    %25 = arith.addf %22, %24 : vector<64x32xf32>
    %cst_16 = arith.constant dense<0.000000e+00> : vector<64xf32>
    %26 = vector.multi_reduction <add>, %25, %cst_16 [1] : vector<64x32xf32> to vector<64xf32>
    %27 = vector.shape_cast %26 : vector<64xf32> to vector<64x1xf32>
    %cst_17 = arith.constant 3.200000e+01 : f32
    %28 = vector.broadcast %cst_17 : f32 to vector<64x1xf32>
    %29 = arith.divf %27, %28 : vector<64x1xf32>
    %30 = vector.broadcast %29 : vector<64x1xf32> to vector<64x32xf32>
    %31 = arith.subf %25, %30 : vector<64x32xf32>
    %32 = vector.broadcast %29 : vector<64x1xf32> to vector<64x32xf32>
    %33 = arith.subf %25, %32 : vector<64x32xf32>
    %34 = arith.mulf %31, %33 : vector<64x32xf32>
    %cst_18 = arith.constant dense<0.000000e+00> : vector<64xf32>
    %35 = vector.multi_reduction <add>, %34, %cst_18 [1] : vector<64x32xf32> to vector<64xf32>
    %36 = vector.shape_cast %35 : vector<64xf32> to vector<64x1xf32>
    %cst_19 = arith.constant 3.200000e+01 : f32
    %37 = vector.broadcast %cst_19 : f32 to vector<64x1xf32>
    %38 = arith.divf %36, %37 : vector<64x1xf32>
    %39 = vector.broadcast %29 : vector<64x1xf32> to vector<64x32xf32>
    %40 = arith.subf %25, %39 : vector<64x32xf32>
    %cst_20 = arith.constant 9.99999974E-6 : f32
    %41 = vector.broadcast %cst_20 : f32 to vector<64x1xf32>
    %42 = arith.addf %38, %41 : vector<64x1xf32>
    %43 = math.rsqrt %42 : vector<64x1xf32>
    %44 = vector.broadcast %43 : vector<64x1xf32> to vector<64x32xf32>
    %45 = arith.mulf %40, %44 : vector<64x32xf32>
    %c0_21 = arith.constant 0 : index
    %c0_22 = arith.constant 0 : index
    %46 = vector.load %arg7[%c0_21, %c0_22] : memref<1x32xf32, #tpu.memory_space<vmem>>, vector<1x32xf32>
    %47 = vector.broadcast %46 : vector<1x32xf32> to vector<64x32xf32>
    %48 = arith.mulf %45, %47 : vector<64x32xf32>
    %c0_23 = arith.constant 0 : index
    %c0_24 = arith.constant 0 : index
    %49 = vector.load %arg8[%c0_23, %c0_24] : memref<1x32xf32, #tpu.memory_space<vmem>>, vector<1x32xf32>
    %50 = vector.broadcast %49 : vector<1x32xf32> to vector<64x32xf32>
    %51 = arith.addf %48, %50 : vector<64x32xf32>
    %52 = vector.shape_cast %51 : vector<64x32xf32> to vector<8x8x32xf32>
    %cst_25 = arith.constant dense<0.000000e+00> : vector<8x32xf32>
    %53 = vector.multi_reduction <add>, %52, %cst_25 [0] : vector<8x8x32xf32> to vector<8x32xf32>
    %cst_26 = arith.constant 8.000000e+00 : f32
    %54 = vector.broadcast %cst_26 : f32 to vector<8x32xf32>
    %55 = arith.divf %53, %54 : vector<8x32xf32>
    %c0_27 = arith.constant 0 : index
    %c0_28 = arith.constant 0 : index
    %56 = vector.load %arg9[%c0_27, %c0_28] : memref<32x8xf32, #tpu.memory_space<vmem>>, vector<32x8xf32>
    %cst_29 = arith.constant dense<0.000000e+00> : vector<8x8xf32>
    %57 = tpu.matmul %55, %56, %cst_29 {dimension_numbers = #tpu.dot_dimension_numbers<[1], [0], [0], [1], [0, 0, 1, 1], [], []>} : vector<8x32xf32>, vector<32x8xf32>, vector<8x8xf32> -> vector<8x8xf32>
    %c0_30 = arith.constant 0 : index
    %c0_31 = arith.constant 0 : index
    %58 = vector.load %arg10[%c0_30, %c0_31] : memref<1x8xf32, #tpu.memory_space<vmem>>, vector<1x8xf32>
    %59 = vector.broadcast %58 : vector<1x8xf32> to vector<8x8xf32>
    %60 = arith.addf %57, %59 : vector<8x8xf32>
    %cst_32 = arith.constant 5.000000e-01 : f32
    %61 = vector.broadcast %cst_32 : f32 to vector<8x8xf32>
    %62 = arith.mulf %61, %60 : vector<8x8xf32>
    %63 = arith.mulf %60, %60 : vector<8x8xf32>
    %64 = arith.mulf %63, %60 : vector<8x8xf32>
    %cst_33 = arith.constant 4.471500e-02 : f32
    %65 = vector.broadcast %cst_33 : f32 to vector<8x8xf32>
    %66 = arith.mulf %65, %64 : vector<8x8xf32>
    %67 = arith.addf %60, %66 : vector<8x8xf32>
    %cst_34 = arith.constant 0.797884583 : f32
    %68 = vector.broadcast %cst_34 : f32 to vector<8x8xf32>
    %69 = arith.mulf %68, %67 : vector<8x8xf32>
    %70 = math.tanh %69 : vector<8x8xf32>
    %cst_35 = arith.constant 1.000000e+00 : f32
    %71 = vector.broadcast %cst_35 : f32 to vector<8x8xf32>
    %72 = arith.addf %71, %70 : vector<8x8xf32>
    %73 = arith.mulf %62, %72 : vector<8x8xf32>
    %c0_36 = arith.constant 0 : index
    %c0_37 = arith.constant 0 : index
    %74 = vector.load %arg13[%c0_36, %c0_37] : memref<8x32xf32, #tpu.memory_space<vmem>>, vector<8x32xf32>
    %cst_38 = arith.constant dense<0.000000e+00> : vector<8x32xf32>
    %75 = tpu.matmul %73, %74, %cst_38 {dimension_numbers = #tpu.dot_dimension_numbers<[1], [0], [0], [1], [0, 0, 1, 1], [], []>} : vector<8x8xf32>, vector<8x32xf32>, vector<8x32xf32> -> vector<8x32xf32>
    %c0_39 = arith.constant 0 : index
    %c0_40 = arith.constant 0 : index
    %76 = vector.load %arg14[%c0_39, %c0_40] : memref<1x32xf32, #tpu.memory_space<vmem>>, vector<1x32xf32>
    %77 = vector.broadcast %76 : vector<1x32xf32> to vector<8x32xf32>
    %78 = arith.addf %75, %77 : vector<8x32xf32>
    %79 = arith.negf %78 : vector<8x32xf32>
    %80 = math.exp %79 : vector<8x32xf32>
    %cst_41 = arith.constant 1.000000e+00 : f32
    %81 = vector.broadcast %cst_41 : f32 to vector<8x32xf32>
    %82 = arith.addf %81, %80 : vector<8x32xf32>
    %83 = arith.divf %81, %82 : vector<8x32xf32>
    %c0_42 = arith.constant 0 : index
    %c0_43 = arith.constant 0 : index
    %84 = vector.load %arg11[%c0_42, %c0_43] : memref<32x8xf32, #tpu.memory_space<vmem>>, vector<32x8xf32>
    %cst_44 = arith.constant dense<0.000000e+00> : vector<64x8xf32>
    %85 = tpu.matmul %51, %84, %cst_44 {dimension_numbers = #tpu.dot_dimension_numbers<[1], [0], [0], [1], [0, 0, 1, 1], [], []>} : vector<64x32xf32>, vector<32x8xf32>, vector<64x8xf32> -> vector<64x8xf32>
    %c0_45 = arith.constant 0 : index
    %c0_46 = arith.constant 0 : index
    %86 = vector.load %arg12[%c0_45, %c0_46] : memref<1x8xf32, #tpu.memory_space<vmem>>, vector<1x8xf32>
    %87 = vector.broadcast %86 : vector<1x8xf32> to vector<64x8xf32>
    %88 = arith.addf %85, %87 : vector<64x8xf32>
    %cst_47 = arith.constant 5.000000e-01 : f32
    %89 = vector.broadcast %cst_47 : f32 to vector<64x8xf32>
    %90 = arith.mulf %89, %88 : vector<64x8xf32>
    %91 = arith.mulf %88, %88 : vector<64x8xf32>
    %92 = arith.mulf %91, %88 : vector<64x8xf32>
    %cst_48 = arith.constant 4.471500e-02 : f32
    %93 = vector.broadcast %cst_48 : f32 to vector<64x8xf32>
    %94 = arith.mulf %93, %92 : vector<64x8xf32>
    %95 = arith.addf %88, %94 : vector<64x8xf32>
    %cst_49 = arith.constant 0.797884583 : f32
    %96 = vector.broadcast %cst_49 : f32 to vector<64x8xf32>
    %97 = arith.mulf %96, %95 : vector<64x8xf32>
    %98 = math.tanh %97 : vector<64x8xf32>
    %cst_50 = arith.constant 1.000000e+00 : f32
    %99 = vector.broadcast %cst_50 : f32 to vector<64x8xf32>
    %100 = arith.addf %99, %98 : vector<64x8xf32>
    %101 = arith.mulf %90, %100 : vector<64x8xf32>
    %102 = vector.shape_cast %101 : vector<64x8xf32> to vector<8x8x8xf32>
    %c0_51 = arith.constant 0 : index
    %c0_52 = arith.constant 0 : index
    %103 = vector.load %arg15[%c0_51, %c0_52] : memref<1x8xf32, #tpu.memory_space<vmem>>, vector<1x8xf32>
    %104 = vector.shape_cast %103 : vector<1x8xf32> to vector<1x1x8xf32>
    %105 = vector.broadcast %104 : vector<1x1x8xf32> to vector<8x8x8xf32>
    %106 = arith.mulf %102, %105 : vector<8x8x8xf32>
    %cst_53 = arith.constant dense<0.000000e+00> : vector<8x8xf32>
    %107 = vector.multi_reduction <add>, %106, %cst_53 [2] : vector<8x8x8xf32> to vector<8x8xf32>
    %108 = vector.shape_cast %107 : vector<8x8xf32> to vector<8x8x1xf32>
    %c0_54 = arith.constant 0 : index
    %c0_55 = arith.constant 0 : index
    %109 = vector.load %arg16[%c0_54, %c0_55] : memref<1x8xf32, #tpu.memory_space<vmem>>, vector<1x8xf32>
    %110 = vector.broadcast %109 : vector<1x8xf32> to vector<8x8xf32>
    %111 = arith.mulf %73, %110 : vector<8x8xf32>
    %cst_56 = arith.constant dense<0.000000e+00> : vector<8xf32>
    %112 = vector.multi_reduction <add>, %111, %cst_56 [1] : vector<8x8xf32> to vector<8xf32>
    %113 = vector.shape_cast %112 : vector<8xf32> to vector<8x1xf32>
    %114 = vector.shape_cast %113 : vector<8x1xf32> to vector<1x8x1xf32>
    %115 = vector.broadcast %114 : vector<1x8x1xf32> to vector<8x8x1xf32>
    %116 = arith.addf %108, %115 : vector<8x8x1xf32>
    %c0_57 = arith.constant 0 : index
    %c0_58 = arith.constant 0 : index
    %117 = vector.load %arg17[%c0_57, %c0_58] : memref<1x1xf32, #tpu.memory_space<vmem>>, vector<1x1xf32>
    %118 = vector.shape_cast %117 : vector<1x1xf32> to vector<1x1x1xf32>
    %119 = vector.broadcast %118 : vector<1x1x1xf32> to vector<8x8x1xf32>
    %120 = arith.addf %116, %119 : vector<8x8x1xf32>
    %121 = arith.negf %120 : vector<8x8x1xf32>
    %122 = math.exp %121 : vector<8x8x1xf32>
    %cst_59 = arith.constant 1.000000e+00 : f32
    %123 = vector.broadcast %cst_59 : f32 to vector<8x8x1xf32>
    %124 = arith.addf %123, %122 : vector<8x8x1xf32>
    %125 = arith.divf %123, %124 : vector<8x8x1xf32>
    %126 = vector.shape_cast %25 : vector<64x32xf32> to vector<8x8x32xf32>
    %127 = vector.shape_cast %83 : vector<8x32xf32> to vector<1x8x32xf32>
    %128 = vector.broadcast %127 : vector<1x8x32xf32> to vector<8x8x32xf32>
    %129 = arith.mulf %126, %128 : vector<8x8x32xf32>
    %130 = vector.broadcast %125 : vector<8x8x1xf32> to vector<8x8x32xf32>
    %131 = arith.mulf %129, %130 : vector<8x8x32xf32>
    %c0_60 = arith.constant 0 : index
    %c0_61 = arith.constant 0 : index
    %c0_62 = arith.constant 0 : index
    %c0_63 = arith.constant 0 : index
    %132 = vector.load %arg18[%c0_60, %c0_61, %c0_62, %c0_63] : memref<1x8x8x32xf32, #tpu.memory_space<vmem>>, vector<1x8x8x32xf32>
    %133 = vector.shape_cast %132 : vector<1x8x8x32xf32> to vector<8x8x32xf32>
    %134 = vector.shape_cast %131 : vector<8x8x32xf32> to vector<1x8x8x32xf32>
    tpu.vector_store %arg18[%c0_60, %c0_61, %c0_62, %c0_63], %134 {strides = array<i32>} : memref<1x8x8x32xf32, #tpu.memory_space<vmem>>, vector<1x8x8x32xf32>,
    return
  }
  func.func @transform_0(%arg0: i32, %arg1: i32) -> (i32, i32, i32, i32) {
    %c0_i32 = arith.constant 0 : i32
    %c0_i32_0 = arith.constant 0 : i32
    %c0_i32_1 = arith.constant 0 : i32
    return %arg0, %c0_i32, %arg1, %c0_i32_0 : i32, i32, i32, i32
  }
  func.func @transform_1(%arg0: i32, %arg1: i32) -> (i32, i32) {
    %c0_i32 = arith.constant 0 : i32
    %c0_i32_0 = arith.constant 0 : i32
    %c0_i32_1 = arith.constant 0 : i32
    return %c0_i32, %c0_i32_0 : i32, i32
  }
  func.func @transform_2(%arg0: i32, %arg1: i32) -> (i32, i32) {
    %c0_i32 = arith.constant 0 : i32
    %c0_i32_0 = arith.constant 0 : i32
    %c0_i32_1 = arith.constant 0 : i32
    return %c0_i32, %c0_i32_0 : i32, i32
  }
  func.func @transform_3(%arg0: i32, %arg1: i32) -> (i32, i32) {
    %c0_i32 = arith.constant 0 : i32
    %c0_i32_0 = arith.constant 0 : i32
    %c0_i32_1 = arith.constant 0 : i32
    return %c0_i32, %c0_i32_0 : i32, i32
  }
  func.func @transform_4(%arg0: i32, %arg1: i32) -> (i32, i32) {
    %c0_i32 = arith.constant 0 : i32
    %c0_i32_0 = arith.constant 0 : i32
    %c0_i32_1 = arith.constant 0 : i32
    return %c0_i32, %c0_i32_0 : i32, i32
  }
  func.func @transform_5(%arg0: i32, %arg1: i32) -> (i32, i32) {
    %c0_i32 = arith.constant 0 : i32
    %c0_i32_0 = arith.constant 0 : i32
    %c0_i32_1 = arith.constant 0 : i32
    return %c0_i32, %c0_i32_0 : i32, i32
  }
  func.func @transform_6(%arg0: i32, %arg1: i32) -> (i32, i32) {
    %c0_i32 = arith.constant 0 : i32
    %c0_i32_0 = arith.constant 0 : i32
    %c0_i32_1 = arith.constant 0 : i32
    return %c0_i32, %c0_i32_0 : i32, i32
  }
  func.func @transform_7(%arg0: i32, %arg1: i32) -> (i32, i32) {
    %c0_i32 = arith.constant 0 : i32
    %c0_i32_0 = arith.constant 0 : i32
    %c0_i32_1 = arith.constant 0 : i32
    return %c0_i32, %c0_i32_0 : i32, i32
  }
  func.func @transform_8(%arg0: i32, %arg1: i32) -> (i32, i32) {
    %c0_i32 = arith.constant 0 : i32
    %c0_i32_0 = arith.constant 0 : i32
    %c0_i32_1 = arith.constant 0 : i32
    return %c0_i32, %c0_i32_0 : i32, i32
  }
  func.func @transform_9(%arg0: i32, %arg1: i32) -> (i32, i32) {
    %c0_i32 = arith.constant 0 : i32
    %c0_i32_0 = arith.constant 0 : i32
    %c0_i32_1 = arith.constant 0 : i32
    return %c0_i32, %c0_i32_0 : i32, i32
  }
  func.func @transform_10(%arg0: i32, %arg1: i32) -> (i32, i32) {
    %c0_i32 = arith.constant 0 : i32
    %c0_i32_0 = arith.constant 0 : i32
    %c0_i32_1 = arith.constant 0 : i32
    return %c0_i32, %c0_i32_0 : i32, i32
  }
  func.func @transform_11(%arg0: i32, %arg1: i32) -> (i32, i32) {
    %c0_i32 = arith.constant 0 : i32
    %c0_i32_0 = arith.constant 0 : i32
    %c0_i32_1 = arith.constant 0 : i32
    return %c0_i32, %c0_i32_0 : i32, i32
  }
  func.func @transform_12(%arg0: i32, %arg1: i32) -> (i32, i32) {
    %c0_i32 = arith.constant 0 : i32
    %c0_i32_0 = arith.constant 0 : i32
    %c0_i32_1 = arith.constant 0 : i32
    return %c0_i32, %c0_i32_0 : i32, i32
  }
  func.func @transform_13(%arg0: i32, %arg1: i32) -> (i32, i32) {
    %c0_i32 = arith.constant 0 : i32
    %c0_i32_0 = arith.constant 0 : i32
    %c0_i32_1 = arith.constant 0 : i32
    return %c0_i32, %c0_i32_0 : i32, i32
  }
  func.func @transform_14(%arg0: i32, %arg1: i32) -> (i32, i32) {
    %c0_i32 = arith.constant 0 : i32
    %c0_i32_0 = arith.constant 0 : i32
    %c0_i32_1 = arith.constant 0 : i32
    return %c0_i32, %c0_i32_0 : i32, i32
  }
  func.func @transform_15(%arg0: i32, %arg1: i32) -> (i32, i32) {
    %c0_i32 = arith.constant 0 : i32
    %c0_i32_0 = arith.constant 0 : i32
    %c0_i32_1 = arith.constant 0 : i32
    return %c0_i32, %c0_i32_0 : i32, i32
  }
  func.func @transform_16(%arg0: i32, %arg1: i32) -> (i32, i32, i32, i32) {
    %c0_i32 = arith.constant 0 : i32
    %c0_i32_0 = arith.constant 0 : i32
    %c0_i32_1 = arith.constant 0 : i32
    return %arg0, %c0_i32, %arg1, %c0_i32_0 : i32, i32, i32, i32
  }
}

</mosaic_0001>

<llo_original>
// kernel: bi_attn_mlp.1
$region0: #{bi_attn_mlp.1}
  #allocation0 [shape = 'u32[]', space=smem, size = 0x4, offset = 0x4, fixed_abs, tag = 'smem constant byte address 0x4 - core index']
  #allocation1 [shape = 'u32[144,128]{1,0:T(1,128)}', space=vmem, size = 0x12000, scoped, tag = 'internal scratch']
  #allocation2 [shape = 'f32[1,1]{1,0:T(1,128)S(1)}', space=vmem, size = 0x200, scoped, tag = 'scoped memory for bi_attn_mlp.1']
  %s0 = inlined_call_operand.hbm [shape: f32[2,8,16,32], index: 0, kind: input, shape index: {}]
  %s1 = inlined_call_operand.vmem [shape: f32[32,64], index: 1, kind: input, shape index: {}]
  %s2 = inlined_call_operand.vmem [shape: f32[1,64], index: 2, kind: input, shape index: {}]
  %s3 = inlined_call_operand.vmem [shape: f32[64,32], index: 3, kind: input, shape index: {}]
  %s4 = inlined_call_operand.vmem [shape: f32[1,32], index: 4, kind: input, shape index: {}]
  %s5 = inlined_call_operand.vmem [shape: f32[1,32], index: 5, kind: input, shape index: {}]
  %s6 = inlined_call_operand.vmem [shape: f32[1,32], index: 6, kind: input, shape index: {}]
  %s7 = inlined_call_operand.vmem [shape: f32[32,8], index: 7, kind: input, shape index: {}]
  %s8 = inlined_call_operand.vmem [shape: f32[1,8], index: 8, kind: input, shape index: {}]
  %s9 = inlined_call_operand.vmem [shape: f32[32,8], index: 9, kind: input, shape index: {}]
  %s10 = inlined_call_operand.vmem [shape: f32[1,8], index: 10, kind: input, shape index: {}]
  %s11 = inlined_call_operand.vmem [shape: f32[8,32], index: 11, kind: input, shape index: {}]
  %s12 = inlined_call_operand.vmem [shape: f32[1,32], index: 12, kind: input, shape index: {}]
  %s13 = inlined_call_operand.vmem [shape: f32[1,8], index: 13, kind: input, shape index: {}]
  %s14 = inlined_call_operand.vmem [shape: f32[1,8], index: 14, kind: input, shape index: {}]
  %s15 = inlined_call_operand.<no memory space> [shape: f32[1,1], index: 15, kind: input, shape index: {}]
  %s16 = inlined_call_operand.hbm [shape: f32[2,8,16,32], index: 16, kind: output, shape index: {}]
  %s17 = sld [smem:[#allocation0]]
  $region101: #{bi_attn_mlp.1} parent=0
    _
  %s19 = ssub.s32 1, %s17
  %s20 = scalar_select 0, %s19, %s17
  %v21 = vstv %s15
  %22 = vst [vmem:[#allocation2] sm:$0x1] %v21
  $region1: #{bi_attn_mlp.1} parent=0
    #allocation3 [shape = 'u8[65536]{0}', space=vmem, size = 0x10000, scoped, tag = 'input window, operand 0']
    #allocation4 [shape = 's32[2]{0}', space=sflag, size = 0x8, scoped, tag = 'scoped memory for bi_attn_mlp.1']
    #allocation5 [shape = 's32[2]{0}', space=sflag, size = 0x8, scoped, tag = 'scoped memory for bi_attn_mlp.1']
    #allocation6 [shape = 'u8[65536]{0}', space=vmem, size = 0x10000, scoped, tag = 'output window, operand 0']
    %23 = vsyncpa [#allocation4], 0
    %s24 = scalar_lea.sflag [#allocation4], 1
    %25 = vsyncpa %s24, 0
    %26 = vsyncpa [#allocation5], 0
    %s27 = scalar_lea.sflag [#allocation5], 1
    %28 = vsyncpa %s27, 0
    loop: start=0, step=1, limit=6
    $region2: #{bi_attn_mlp.1} parent=1 // loop_pre_header
      _
    $region3: #{bi_attn_mlp.1} parent=1 // loop_header
      %s30 = sphi 0, %s34
      %p31 = scmp.ge.s32.totalorder %s30, 6
      %s37 = sphi 0, %s49
      %s38 = sphi 0, %s45
      %s39 = sphi 0, %s37
      %s40 = sphi 0, %s38
      %s41 = sphi 0, %s39
      %s42 = sphi 0, %s40
      %s54 = sphi 0, %s56
      %s57 = sphi 0, %s54
      %s58 = sphi 0, %s57
      %s74 = sphi 0, %s58
      %s78 = sphi 0, %s78
      %s80 = sphi 0, %s78
      %s81 = sphi 0, %s80
      %s95 = sphi 0, %s81
      %s99 = sphi 0, %s99
      %s101 = sphi 0, %s99
      %s102 = sphi 0, %s101
      %s116 = sphi 0, %s102
      %s120 = sphi 0, %s120
      %s122 = sphi 0, %s120
      %s123 = sphi 0, %s122
      %s137 = sphi 0, %s123
      %s141 = sphi 0, %s141
      %s143 = sphi 0, %s141
      %s144 = sphi 0, %s143
      %s158 = sphi 0, %s144
      %s162 = sphi 0, %s162
      %s164 = sphi 0, %s162
      %s165 = sphi 0, %s164
      %s179 = sphi 0, %s165
      %s183 = sphi 0, %s183
      %s185 = sphi 0, %s183
      %s186 = sphi 0, %s185
      %s200 = sphi 0, %s186
      %s204 = sphi 0, %s204
      %s206 = sphi 0, %s204
      %s207 = sphi 0, %s206
      %s221 = sphi 0, %s207
      %s225 = sphi 0, %s225
      %s227 = sphi 0, %s225
      %s228 = sphi 0, %s227
      %s242 = sphi 0, %s228
      %s246 = sphi 0, %s246
      %s248 = sphi 0, %s246
      %s249 = sphi 0, %s248
      %s263 = sphi 0, %s249
      %s267 = sphi 0, %s267
      %s269 = sphi 0, %s267
      %s270 = sphi 0, %s269
      %s284 = sphi 0, %s270
      %s288 = sphi 0, %s288
      %s290 = sphi 0, %s288
      %s291 = sphi 0, %s290
      %s305 = sphi 0, %s291
      %s309 = sphi 0, %s309
      %s311 = sphi 0, %s309
      %s312 = sphi 0, %s311
      %s326 = sphi 0, %s312
      %s330 = sphi 0, %s330
      %s332 = sphi 0, %s330
      %s333 = sphi 0, %s332
      %s347 = sphi 0, %s333
      %s351 = sphi 0, %s351
      %s353 = sphi 0, %s351
      %s354 = sphi 0, %s353
      %s368 = sphi 0, %s354
      %s372 = sphi 0, %s372
      %s374 = sphi 0, %s372
      %s375 = sphi 0, %s374
      %s389 = sphi 0, %s375
      %s397 = sphi 0, %s399
      %s400 = sphi 0, %s397
      %s401 = sphi 0, %s400
      %s417 = sphi 0, %s401
    $region4: #{bi_attn_mlp.1} parent=1 // loop_header_branch
      %33 = sbr.rel (%p31) target = $region8
    $region5: #{bi_attn_mlp.1} parent=1 // loop_body
      %s35 = ssub.s32 %s30, 1
      %s36 = ssub.s32 %s30, 2
      %s43 = sadd.s32 1, %s38
      %p44 = scmp.ge.s32.totalorder %s43, 2
      %s45 = scalar_select %p44, 0, %s43
      %s46 = sadd.s32 1, %s37
      %s47 = scalar_select %p44, %s46, %s37
      %p48 = scmp.ge.s32.totalorder %s47, 2
      %s49 = scalar_select %p48, 0, %s47
      %s50 = ssub.s32 %s37, %s49
      %s51 = ssub.s32 %s38, %s45
      %s52 = sor.u32 %s50, %s51
      %p53 = scmp.eq.s32.totalorder %s52, 0
      %s55 = sadd.s32 %s54, 1
      %s56 = scalar_select %p53, %s54, %s55
      %p59 = pneg %p53
      %p60 = scmp.eq.s32.totalorder %s30, 3
      %p61 = por %p59, %p60
      %p62 = scmp.ne.s32.totalorder %s54, %s57
      %p63 = scmp.eq.s32.totalorder %s30, 0
      %p64 = por %p62, %p63
      %p65 = scmp.ne.s32.totalorder %s54, %s57
      %p66 = scmp.eq.s32.totalorder %s35, 3
      %p67 = por %p65, %p66
      %p68 = scmp.ne.s32.totalorder %s57, %s58
      %p69 = scmp.eq.s32.totalorder %s35, 0
      %p70 = por %p68, %p69
      %p71 = scmp.ne.s32.totalorder %s57, %s58
      %p72 = scmp.eq.s32.totalorder %s36, 3
      %p73 = por %p71, %p72
      %p75 = scmp.ne.s32.totalorder %s58, %s74
      %p76 = scmp.eq.s32.totalorder %s36, 0
      %p77 = por %p75, %p76
      %s79 = sadd.s32 %s78, 1
      %p82 = scmp.eq.s32.totalorder %s30, 3
      %p83 = scmp.ne.s32.totalorder %s78, %s80
      %p84 = scmp.eq.s32.totalorder %s30, 0
      %p85 = por %p83, %p84
      %p86 = scmp.ne.s32.totalorder %s78, %s80
      %p87 = scmp.eq.s32.totalorder %s35, 3
      %p88 = por %p86, %p87
      %p89 = scmp.ne.s32.totalorder %s80, %s81
      %p90 = scmp.eq.s32.totalorder %s35, 0
      %p91 = por %p89, %p90
      %p92 = scmp.ne.s32.totalorder %s80, %s81
      %p93 = scmp.eq.s32.totalorder %s36, 3
      %p94 = por %p92, %p93
      %p96 = scmp.ne.s32.totalorder %s81, %s95
      %p97 = scmp.eq.s32.totalorder %s36, 0
      %p98 = por %p96, %p97
      %s100 = sadd.s32 %s99, 1
      %p103 = scmp.eq.s32.totalorder %s30, 3
      %p104 = scmp.ne.s32.totalorder %s99, %s101
      %p105 = scmp.eq.s32.totalorder %s30, 0
      %p106 = por %p104, %p105
      %p107 = scmp.ne.s32.totalorder %s99, %s101
      %p108 = scmp.eq.s32.totalorder %s35, 3
      %p109 = por %p107, %p108
      %p110 = scmp.ne.s32.totalorder %s101, %s102
      %p111 = scmp.eq.s32.totalorder %s35, 0
      %p112 = por %p110, %p111
      %p113 = scmp.ne.s32.totalorder %s101, %s102
      %p114 = scmp.eq.s32.totalorder %s36, 3
      %p115 = por %p113, %p114
      %p117 = scmp.ne.s32.totalorder %s102, %s116
      %p118 = scmp.eq.s32.totalorder %s36, 0
      %p119 = por %p117, %p118
      %s121 = sadd.s32 %s120, 1
      %p124 = scmp.eq.s32.totalorder %s30, 3
      %p125 = scmp.ne.s32.totalorder %s120, %s122
      %p126 = scmp.eq.s32.totalorder %s30, 0
      %p127 = por %p125, %p126
      %p128 = scmp.ne.s32.totalorder %s120, %s122
      %p129 = scmp.eq.s32.totalorder %s35, 3
      %p130 = por %p128, %p129
      %p131 = scmp.ne.s32.totalorder %s122, %s123
      %p132 = scmp.eq.s32.totalorder %s35, 0
      %p133 = por %p131, %p132
      %p134 = scmp.ne.s32.totalorder %s122, %s123
      %p135 = scmp.eq.s32.totalorder %s36, 3
      %p136 = por %p134, %p135
      %p138 = scmp.ne.s32.totalorder %s123, %s137
      %p139 = scmp.eq.s32.totalorder %s36, 0
      %p140 = por %p138, %p139
      %s142 = sadd.s32 %s141, 1
      %p145 = scmp.eq.s32.totalorder %s30, 3
      %p146 = scmp.ne.s32.totalorder %s141, %s143
      %p147 = scmp.eq.s32.totalorder %s30, 0
      %p148 = por %p146, %p147
      %p149 = scmp.ne.s32.totalorder %s141, %s143
      %p150 = scmp.eq.s32.totalorder %s35, 3
      %p151 = por %p149, %p150
      %p152 = scmp.ne.s32.totalorder %s143, %s144
      %p153 = scmp.eq.s32.totalorder %s35, 0
      %p154 = por %p152, %p153
      %p155 = scmp.ne.s32.totalorder %s143, %s144
      %p156 = scmp.eq.s32.totalorder %s36, 3
      %p157 = por %p155, %p156
      %p159 = scmp.ne.s32.totalorder %s144, %s158
      %p160 = scmp.eq.s32.totalorder %s36, 0
      %p161 = por %p159, %p160
      %s163 = sadd.s32 %s162, 1
      %p166 = scmp.eq.s32.totalorder %s30, 3
      %p167 = scmp.ne.s32.totalorder %s162, %s164
      %p168 = scmp.eq.s32.totalorder %s30, 0
      %p169 = por %p167, %p168
      %p170 = scmp.ne.s32.totalorder %s162, %s164
      %p171 = scmp.eq.s32.totalorder %s35, 3
      %p172 = por %p170, %p171
      %p173 = scmp.ne.s32.totalorder %s164, %s165
      %p174 = scmp.eq.s32.totalorder %s35, 0
      %p175 = por %p173, %p174
      %p176 = scmp.ne.s32.totalorder %s164, %s165
      %p177 = scmp.eq.s32.totalorder %s36, 3
      %p178 = por %p176, %p177
      %p180 = scmp.ne.s32.totalorder %s165, %s179
      %p181 = scmp.eq.s32.totalorder %s36, 0
      %p182 = por %p180, %p181
      %s184 = sadd.s32 %s183, 1
      %p187 = scmp.eq.s32.totalorder %s30, 3
      %p188 = scmp.ne.s32.totalorder %s183, %s185
      %p189 = scmp.eq.s32.totalorder %s30, 0
      %p190 = por %p188, %p189
      %p191 = scmp.ne.s32.totalorder %s183, %s185
      %p192 = scmp.eq.s32.totalorder %s35, 3
      %p193 = por %p191, %p192
      %p194 = scmp.ne.s32.totalorder %s185, %s186
      %p195 = scmp.eq.s32.totalorder %s35, 0
      %p196 = por %p194, %p195
      %p197 = scmp.ne.s32.totalorder %s185, %s186
      %p198 = scmp.eq.s32.totalorder %s36, 3
      %p199 = por %p197, %p198
      %p201 = scmp.ne.s32.totalorder %s186, %s200
      %p202 = scmp.eq.s32.totalorder %s36, 0
      %p203 = por %p201, %p202
      %s205 = sadd.s32 %s204, 1
      %p208 = scmp.eq.s32.totalorder %s30, 3
      %p209 = scmp.ne.s32.totalorder %s204, %s206
      %p210 = scmp.eq.s32.totalorder %s30, 0
      %p211 = por %p209, %p210
      %p212 = scmp.ne.s32.totalorder %s204, %s206
      %p213 = scmp.eq.s32.totalorder %s35, 3
      %p214 = por %p212, %p213
      %p215 = scmp.ne.s32.totalorder %s206, %s207
      %p216 = scmp.eq.s32.totalorder %s35, 0
      %p217 = por %p215, %p216
      %p218 = scmp.ne.s32.totalorder %s206, %s207
      %p219 = scmp.eq.s32.totalorder %s36, 3
      %p220 = por %p218, %p219
      %p222 = scmp.ne.s32.totalorder %s207, %s221
      %p223 = scmp.eq.s32.totalorder %s36, 0
      %p224 = por %p222, %p223
      %s226 = sadd.s32 %s225, 1
      %p229 = scmp.eq.s32.totalorder %s30, 3
      %p230 = scmp.ne.s32.totalorder %s225, %s227
      %p231 = scmp.eq.s32.totalorder %s30, 0
      %p232 = por %p230, %p231
      %p233 = scmp.ne.s32.totalorder %s225, %s227
      %p234 = scmp.eq.s32.totalorder %s35, 3
      %p235 = por %p233, %p234
      %p236 = scmp.ne.s32.totalorder %s227, %s228
      %p237 = scmp.eq.s32.totalorder %s35, 0
      %p238 = por %p236, %p237
      %p239 = scmp.ne.s32.totalorder %s227, %s228
      %p240 = scmp.eq.s32.totalorder %s36, 3
      %p241 = por %p239, %p240
      %p243 = scmp.ne.s32.totalorder %s228, %s242
      %p244 = scmp.eq.s32.totalorder %s36, 0
      %p245 = por %p243, %p244
      %s247 = sadd.s32 %s246, 1
      %p250 = scmp.eq.s32.totalorder %s30, 3
      %p251 = scmp.ne.s32.totalorder %s246, %s248
      %p252 = scmp.eq.s32.totalorder %s30, 0
      %p253 = por %p251, %p252
      %p254 = scmp.ne.s32.totalorder %s246, %s248
      %p255 = scmp.eq.s32.totalorder %s35, 3
      %p256 = por %p254, %p255
      %p257 = scmp.ne.s32.totalorder %s248, %s249
      %p258 = scmp.eq.s32.totalorder %s35, 0
      %p259 = por %p257, %p258
      %p260 = scmp.ne.s32.totalorder %s248, %s249
      %p261 = scmp.eq.s32.totalorder %s36, 3
      %p262 = por %p260, %p261
      %p264 = scmp.ne.s32.totalorder %s249, %s263
      %p265 = scmp.eq.s32.totalorder %s36, 0
      %p266 = por %p264, %p265
      %s268 = sadd.s32 %s267, 1
      %p271 = scmp.eq.s32.totalorder %s30, 3
      %p272 = scmp.ne.s32.totalorder %s267, %s269
      %p273 = scmp.eq.s32.totalorder %s30, 0
      %p274 = por %p272, %p273
      %p275 = scmp.ne.s32.totalorder %s267, %s269
      %p276 = scmp.eq.s32.totalorder %s35, 3
      %p277 = por %p275, %p276
      %p278 = scmp.ne.s32.totalorder %s269, %s270
      %p279 = scmp.eq.s32.totalorder %s35, 0
      %p280 = por %p278, %p279
      %p281 = scmp.ne.s32.totalorder %s269, %s270
      %p282 = scmp.eq.s32.totalorder %s36, 3
      %p283 = por %p281, %p282
      %p285 = scmp.ne.s32.totalorder %s270, %s284
      %p286 = scmp.eq.s32.totalorder %s36, 0
      %p287 = por %p285, %p286
      %s289 = sadd.s32 %s288, 1
      %p292 = scmp.eq.s32.totalorder %s30, 3
      %p293 = scmp.ne.s32.totalorder %s288, %s290
      %p294 = scmp.eq.s32.totalorder %s30, 0
      %p295 = por %p293, %p294
      %p296 = scmp.ne.s32.totalorder %s288, %s290
      %p297 = scmp.eq.s32.totalorder %s35, 3
      %p298 = por %p296, %p297
      %p299 = scmp.ne.s32.totalorder %s290, %s291
      %p300 = scmp.eq.s32.totalorder %s35, 0
      %p301 = por %p299, %p300
      %p302 = scmp.ne.s32.totalorder %s290, %s291
      %p303 = scmp.eq.s32.totalorder %s36, 3
      %p304 = por %p302, %p303
      %p306 = scmp.ne.s32.totalorder %s291, %s305
      %p307 = scmp.eq.s32.totalorder %s36, 0
      %p308 = por %p306, %p307
      %s310 = sadd.s32 %s309, 1
      %p313 = scmp.eq.s32.totalorder %s30, 3
      %p314 = scmp.ne.s32.totalorder %s309, %s311
      %p315 = scmp.eq.s32.totalorder %s30, 0
      %p316 = por %p314, %p315
      %p317 = scmp.ne.s32.totalorder %s309, %s311
      %p318 = scmp.eq.s32.totalorder %s35, 3
      %p319 = por %p317, %p318
      %p320 = scmp.ne.s32.totalorder %s311, %s312
      %p321 = scmp.eq.s32.totalorder %s35, 0
      %p322 = por %p320, %p321
      %p323 = scmp.ne.s32.totalorder %s311, %s312
      %p324 = scmp.eq.s32.totalorder %s36, 3
      %p325 = por %p323, %p324
      %p327 = scmp.ne.s32.totalorder %s312, %s326
      %p328 = scmp.eq.s32.totalorder %s36, 0
      %p329 = por %p327, %p328
      %s331 = sadd.s32 %s330, 1
      %p334 = scmp.eq.s32.totalorder %s30, 3
      %p335 = scmp.ne.s32.totalorder %s330, %s332
      %p336 = scmp.eq.s32.totalorder %s30, 0
      %p337 = por %p335, %p336
      %p338 = scmp.ne.s32.totalorder %s330, %s332
      %p339 = scmp.eq.s32.totalorder %s35, 3
      %p340 = por %p338, %p339
      %p341 = scmp.ne.s32.totalorder %s332, %s333
      %p342 = scmp.eq.s32.totalorder %s35, 0
      %p343 = por %p341, %p342
      %p344 = scmp.ne.s32.totalorder %s332, %s333
      %p345 = scmp.eq.s32.totalorder %s36, 3
      %p346 = por %p344, %p345
      %p348 = scmp.ne.s32.totalorder %s333, %s347
      %p349 = scmp.eq.s32.totalorder %s36, 0
      %p350 = por %p348, %p349
      %s352 = sadd.s32 %s351, 1
      %p355 = scmp.eq.s32.totalorder %s30, 3
      %p356 = scmp.ne.s32.totalorder %s351, %s353
      %p357 = scmp.eq.s32.totalorder %s30, 0
      %p358 = por %p356, %p357
      %p359 = scmp.ne.s32.totalorder %s351, %s353
      %p360 = scmp.eq.s32.totalorder %s35, 3
      %p361 = por %p359, %p360
      %p362 = scmp.ne.s32.totalorder %s353, %s354
      %p363 = scmp.eq.s32.totalorder %s35, 0
      %p364 = por %p362, %p363
      %p365 = scmp.ne.s32.totalorder %s353, %s354
      %p366 = scmp.eq.s32.totalorder %s36, 3
      %p367 = por %p365, %p366
      %p369 = scmp.ne.s32.totalorder %s354, %s368
      %p370 = scmp.eq.s32.totalorder %s36, 0
      %p371 = por %p369, %p370
      %s373 = sadd.s32 %s372, 1
      %p376 = scmp.eq.s32.totalorder %s30, 3
      %p377 = scmp.ne.s32.totalorder %s372, %s374
      %p378 = scmp.eq.s32.totalorder %s30, 0
      %p379 = por %p377, %p378
      %p380 = scmp.ne.s32.totalorder %s372, %s374
      %p381 = scmp.eq.s32.totalorder %s35, 3
      %p382 = por %p380, %p381
      %p383 = scmp.ne.s32.totalorder %s374, %s375
      %p384 = scmp.eq.s32.totalorder %s35, 0
      %p385 = por %p383, %p384
      %p386 = scmp.ne.s32.totalorder %s374, %s375
      %p387 = scmp.eq.s32.totalorder %s36, 3
      %p388 = por %p386, %p387
      %p390 = scmp.ne.s32.totalorder %s375, %s389
      %p391 = scmp.eq.s32.totalorder %s36, 0
      %p392 = por %p390, %p391
      %s393 = ssub.s32 %s37, %s49
      %s394 = ssub.s32 %s38, %s45
      %s395 = sor.u32 %s393, %s394
      %p396 = scmp.eq.s32.totalorder %s395, 0
      %s398 = sadd.s32 %s397, 1
      %s399 = scalar_select %p396, %s397, %s398
      %p402 = pneg %p396
      %p403 = scmp.eq.s32.totalorder %s30, 3
      %p404 = por %p402, %p403
      %p405 = scmp.ne.s32.totalorder %s397, %s400
      %p406 = scmp.eq.s32.totalorder %s30, 0
      %p407 = por %p405, %p406
      %p408 = scmp.ne.s32.totalorder %s397, %s400
      %p409 = scmp.eq.s32.totalorder %s35, 3
      %p410 = por %p408, %p409
      %p411 = scmp.ne.s32.totalorder %s400, %s401
      %p412 = scmp.eq.s32.totalorder %s35, 0
      %p413 = por %p411, %p412
      %p414 = scmp.ne.s32.totalorder %s400, %s401
      %p415 = scmp.eq.s32.totalorder %s36, 3
      %p416 = por %p414, %p415
      %p418 = scmp.ne.s32.totalorder %s401, %s417
      %p419 = scmp.eq.s32.totalorder %s36, 0
      %p420 = por %p418, %p419
      %p421 = scmp.le.s32.totalorder 1, %s30
      %p422 = scmp.lt.s32.totalorder %s30, 5
      %p423 = pnand %p421, %p422
      %p424 = pneg %p423
      // Predicated region
      $region9: #{bi_attn_mlp.1} parent=5 // pred_check
        _
      $region10: #{bi_attn_mlp.1} parent=5 // pred_check_branch
        %426 = sbr.rel (%p423) target = $region12
      $region11: #{bi_attn_mlp.1} parent=5 // pred_region
        %s427 = ssub.s32 %s30, 1
        // Predicated region
        $region13: #{bi_attn_mlp.1} parent=11 // pred_check
          %p428 = pneg %p91
        $region14: #{bi_attn_mlp.1} parent=11 // pred_check_branch
          %430 = sbr.rel (%p428) target = $region16
        $region15: #{bi_attn_mlp.1} parent=11 // pred_region
          _
        $region16: #{bi_attn_mlp.1} parent=11 // pred_fallthru
          _
        // Predicated region
        $region17: #{bi_attn_mlp.1} parent=11 // pred_check
          %p431 = pneg %p112
        $region18: #{bi_attn_mlp.1} parent=11 // pred_check_branch
          %433 = sbr.rel (%p431) target = $region20
        $region19: #{bi_attn_mlp.1} parent=11 // pred_region
          _
        $region20: #{bi_attn_mlp.1} parent=11 // pred_fallthru
          _
        // Predicated region
        $region21: #{bi_attn_mlp.1} parent=11 // pred_check
          %p434 = pneg %p133
        $region22: #{bi_attn_mlp.1} parent=11 // pred_check_branch
          %436 = sbr.rel (%p434) target = $region24
        $region23: #{bi_attn_mlp.1} parent=11 // pred_region
          _
        $region24: #{bi_attn_mlp.1} parent=11 // pred_fallthru
          _
        // Predicated region
        $region25: #{bi_attn_mlp.1} parent=11 // pred_check
          %p437 = pneg %p154
        $region26: #{bi_attn_mlp.1} parent=11 // pred_check_branch
          %439 = sbr.rel (%p437) target = $region28
        $region27: #{bi_attn_mlp.1} parent=11 // pred_region
          _
        $region28: #{bi_attn_mlp.1} parent=11 // pred_fallthru
          _
        // Predicated region
        $region29: #{bi_attn_mlp.1} parent=11 // pred_check
          %p440 = pneg %p175
        $region30: #{bi_attn_mlp.1} parent=11 // pred_check_branch
          %442 = sbr.rel (%p440) target = $region32
        $region31: #{bi_attn_mlp.1} parent=11 // pred_region
          _
        $region32: #{bi_attn_mlp.1} parent=11 // pred_fallthru
          _
        // Predicated region
        $region33: #{bi_attn_mlp.1} parent=11 // pred_check
          %p443 = pneg %p196
        $region34: #{bi_attn_mlp.1} parent=11 // pred_check_branch
          %445 = sbr.rel (%p443) target = $region36
        $region35: #{bi_attn_mlp.1} parent=11 // pred_region
          _
        $region36: #{bi_attn_mlp.1} parent=11 // pred_fallthru
          _
        // Predicated region
        $region37: #{bi_attn_mlp.1} parent=11 // pred_check
          %p446 = pneg %p217
        $region38: #{bi_attn_mlp.1} parent=11 // pred_check_branch
          %448 = sbr.rel (%p446) target = $region40
        $region39: #{bi_attn_mlp.1} parent=11 // pred_region
          _
        $region40: #{bi_attn_mlp.1} parent=11 // pred_fallthru
          _
        // Predicated region
        $region41: #{bi_attn_mlp.1} parent=11 // pred_check
          %p449 = pneg %p238
        $region42: #{bi_attn_mlp.1} parent=11 // pred_check_branch
          %451 = sbr.rel (%p449) target = $region44
        $region43: #{bi_attn_mlp.1} parent=11 // pred_region
          _
        $region44: #{bi_attn_mlp.1} parent=11 // pred_fallthru
          _
        // Predicated region
        $region45: #{bi_attn_mlp.1} parent=11 // pred_check
          %p452 = pneg %p259
        $region46: #{bi_attn_mlp.1} parent=11 // pred_check_branch
          %454 = sbr.rel (%p452) target = $region48
        $region47: #{bi_attn_mlp.1} parent=11 // pred_region
          _
        $region48: #{bi_attn_mlp.1} parent=11 // pred_fallthru
          _
        // Predicated region
        $region49: #{bi_attn_mlp.1} parent=11 // pred_check
          %p455 = pneg %p280
        $region50: #{bi_attn_mlp.1} parent=11 // pred_check_branch
          %457 = sbr.rel (%p455) target = $region52
        $region51: #{bi_attn_mlp.1} parent=11 // pred_region
          _
        $region52: #{bi_attn_mlp.1} parent=11 // pred_fallthru
          _
        // Predicated region
        $region53: #{bi_attn_mlp.1} parent=11 // pred_check
          %p458 = pneg %p301
        $region54: #{bi_attn_mlp.1} parent=11 // pred_check_branch
          %460 = sbr.rel (%p458) target = $region56
        $region55: #{bi_attn_mlp.1} parent=11 // pred_region
          _
        $region56: #{bi_attn_mlp.1} parent=11 // pred_fallthru
          _
        // Predicated region
        $region57: #{bi_attn_mlp.1} parent=11 // pred_check
          %p461 = pneg %p322
        $region58: #{bi_attn_mlp.1} parent=11 // pred_check_branch
          %463 = sbr.rel (%p461) target = $region60
        $region59: #{bi_attn_mlp.1} parent=11 // pred_region
          _
        $region60: #{bi_attn_mlp.1} parent=11 // pred_fallthru
          _
        // Predicated region
        $region61: #{bi_attn_mlp.1} parent=11 // pred_check
          %p464 = pneg %p343
        $region62: #{bi_attn_mlp.1} parent=11 // pred_check_branch
          %466 = sbr.rel (%p464) target = $region64
        $region63: #{bi_attn_mlp.1} parent=11 // pred_region
          _
        $region64: #{bi_attn_mlp.1} parent=11 // pred_fallthru
          _
        // Predicated region
        $region65: #{bi_attn_mlp.1} parent=11 // pred_check
          %p467 = pneg %p364
        $region66: #{bi_attn_mlp.1} parent=11 // pred_check_branch
          %469 = sbr.rel (%p467) target = $region68
        $region67: #{bi_attn_mlp.1} parent=11 // pred_region
          _
        $region68: #{bi_attn_mlp.1} parent=11 // pred_fallthru
          _
        // Predicated region
        $region69: #{bi_attn_mlp.1} parent=11 // pred_check
          %p470 = pneg %p385
        $region70: #{bi_attn_mlp.1} parent=11 // pred_check_branch
          %472 = sbr.rel (%p470) target = $region72
        $region71: #{bi_attn_mlp.1} parent=11 // pred_region
          _
        $region72: #{bi_attn_mlp.1} parent=11 // pred_fallthru
          _
      $region12: #{bi_attn_mlp.1} parent=5 // pred_fallthru
        _
      %p473 = scmp.lt.s32.totalorder %s30, 4
      // Predicated region
      $region73: #{bi_attn_mlp.1} parent=5 // pred_check
        %p474 = pneg %p473
      $region74: #{bi_attn_mlp.1} parent=5 // pred_check_branch
        %476 = sbr.rel (%p474) target = $region76
      $region75: #{bi_attn_mlp.1} parent=5 // pred_region
        // Predicated region
        $region77: #{bi_attn_mlp.1} parent=75 // pred_check
          %p477 = pneg %p64
        $region78: #{bi_attn_mlp.1} parent=75 // pred_check_branch
          %479 = sbr.rel (%p477) target = $region80
        $region79: #{bi_attn_mlp.1} parent=75 // pred_region
          %s480 = sand.u32 %s54, 1
          %s481 = scalar_lea.sflag [#allocation4], %s480
          %s482 = sand.u32 %s54, 1
          %s483 = smul.addr %s482, 64
          %s484 = scalar_lea.vmem [#allocation3], %s483
          %s486 = ssub.s32 1024, 1024
          %487 = vsyncadd %s481, %s486
          %s488 = smul.addr %s37, 16
          %s489 = sadd.s32 %s38, %s488
          %s490 = smul.addr %s489, 128
          %s491 = scalar_lea.hbm %s0, %s490
          %s492 = sshll.u32 %s484, 4
          %s493 = int_to_ptr.vmem [resolvable:$true] %s492
          %498 = dma.hbm_to_vmem [thread:$0]  %s491, 1024, %s493, %s481, 256, 128, 8
        $region80: #{bi_attn_mlp.1} parent=75 // pred_fallthru
          _
      $region76: #{bi_attn_mlp.1} parent=5 // pred_fallthru
        _
      %p499 = scmp.le.s32.totalorder 1, %s30
      %p500 = scmp.lt.s32.totalorder %s30, 5
      %p501 = pnand %p499, %p500
      %p502 = pneg %p501
      // Predicated region
      $region81: #{bi_attn_mlp.1} parent=5 // pred_check
        _
      $region82: #{bi_attn_mlp.1} parent=5 // pred_check_branch
        %504 = sbr.rel (%p501) target = $region84
      $region83: #{bi_attn_mlp.1} parent=5 // pred_region
        %s505 = ssub.s32 %s30, 1
        %s506 = sand.u32 %s57, 1
        %s507 = scalar_lea.sflag [#allocation4], %s506
        %s508 = sand.u32 %s57, 1
        %s509 = smul.addr %s508, 64
        %s510 = scalar_lea.vmem [#allocation3], %s509
        // Predicated region
        $region85: #{bi_attn_mlp.1} parent=83 // pred_check
          %p511 = pneg %p70
        $region86: #{bi_attn_mlp.1} parent=83 // pred_check_branch
          %513 = sbr.rel (%p511) target = $region88
        $region87: #{bi_attn_mlp.1} parent=83 // pred_region
          %514 = dma.done %s507, 1024
        $region88: #{bi_attn_mlp.1} parent=83 // pred_fallthru
          _
        %s515 = sand.u32 %s57, 1
        %s516 = scalar_lea.sflag [#allocation4], %s515
        %s517 = sand.u32 %s57, 1
        %s518 = smul.addr %s517, 64
        %s519 = scalar_lea.vmem [#allocation3], %s518
        %p520 = pneg %p70
        %p521 = pneg %p67
        %p522 = pneg %p91
        %p523 = pneg %p88
        %p524 = pneg %p112
        %p525 = pneg %p109
        %p526 = pneg %p133
        %p527 = pneg %p130
        %p528 = pneg %p154
        %p529 = pneg %p151
        %p530 = pneg %p175
        %p531 = pneg %p172
        %p532 = pneg %p196
        %p533 = pneg %p193
        %p534 = pneg %p217
        %p535 = pneg %p214
        %p536 = pneg %p238
        %p537 = pneg %p235
        %p538 = pneg %p259
        %p539 = pneg %p256
        %p540 = pneg %p280
        %p541 = pneg %p277
        %p542 = pneg %p301
        %p543 = pneg %p298
        %p544 = pneg %p322
        %p545 = pneg %p319
        %p546 = pneg %p343
        %p547 = pneg %p340
        %p548 = pneg %p364
        %p549 = pneg %p361
        %p550 = pneg %p385
        %p551 = pneg %p382
        %p552 = pneg %p413
        %p553 = pneg %p410
        %s554 = sand.u32 %s400, 1
        %s555 = scalar_lea.sflag [#allocation5], %s554
        %s556 = sand.u32 %s400, 1
        %s557 = smul.addr %s556, 64
        %s558 = scalar_lea.vmem [#allocation6], %s557
        %v559 = vld [vmem:[%s510] sm:$0xff]
        %v560 = vld [vmem:[%s510 + $0x8] sm:$0xff]
        %v561 = vld [vmem:[%s510 + $0x10] sm:$0xff]
        %v562 = vld [vmem:[%s510 + $0x18] sm:$0xff]
        %v563 = vld [vmem:[%s510 + $0x20] sm:$0xff]
        %v564 = vld [vmem:[%s510 + $0x28] sm:$0xff]
        %v565 = vld [vmem:[%s510 + $0x30] sm:$0xff]
        %v566 = vld [vmem:[%s510 + $0x38] sm:$0xff]
        %v567 = vld [vmem:[%s1] sm:$0xff]
        %v568 = vld [vmem:[%s1 + $0x8] sm:$0xff]
        %v569 = vld [vmem:[%s1 + $0x10] sm:$0xff]
        %v570 = vld [vmem:[%s1 + $0x18] sm:$0xff]
        %v571 = vld [vmem:[%s2] sm:$0x1]
        %v573 = vlaneseq
        %v574 = vshrl.u32 %v573, 7
        %v575 = vsub.s32 0, %v574
        %v576 = vrot.slane %v571, %v575
        %vm578 = vcmask 261120
        %v580 = vsel %vm578, %v559, 0
        %v583 = vsel %vm578, %v560, 0
        %v586 = vsel %vm578, %v561, 0
        %v589 = vsel %vm578, %v562, 0
        %v592 = vsel %vm578, %v563, 0
        %v595 = vsel %vm578, %v564, 0
        %v598 = vsel %vm578, %v565, 0
        %v601 = vsel %vm578, %v566, 0
        %603 = vmatprep.subr.mxu0 0.0
        %604 = vmatpush1.msra.mxu0 0.0
        %605 = vmatprep.subr.mxu0 0.0
        %606 = vmatpush1.msra.mxu0 0.0
        %607 = vmatprep.subr.mxu0 0.0
        %608 = vmatpush1.msra.mxu0 0.0
        %609 = vmatprep.subr.mxu0 0.0
        %610 = vmatpush1.msra.mxu0 0.0
        %611 = vmatprep.subr.mxu0 0.0
        %612 = vmatpush1.msra.mxu0 0.0
        %613 = vmatprep.subr.mxu0 0.0
        %614 = vmatpush1.msra.mxu0 0.0
        %615 = vmatprep.subr.mxu0 0.0
        %616 = vmatpush1.msra.mxu0 0.0
        %617 = vmatprep.subr.mxu0 0.0
        %618 = vmatpush1.msra.mxu0 0.0
        %619 = vmatprep.subr.mxu0 0.0
        %620 = vmatpush1.msra.mxu0 0.0
        %621 = vmatprep.subr.mxu0 0.0
        %622 = vmatpush1.msra.mxu0 0.0
        %623 = vmatprep.subr.mxu0 0.0
        %624 = vmatpush1.msra.mxu0 0.0
        %625 = vmatprep.subr.mxu0 0.0
        %626 = vmatpush1.msra.mxu0 0.0
        %627 = vmatprep.subr.mxu0 0.0
        %628 = vmatpush1.msra.mxu0 %v570
        %629 = vmatprep.subr.mxu0 0.0
        %630 = vmatpush1.msra.mxu0 %v569
        %631 = vmatprep.subr.mxu0 0.0
        %632 = vmatpush1.msra.mxu0 %v568
        %633 = vmatprep.subr.mxu0 0.0
        %634 = vmatpush1.msra.mxu0 %v567
        %635 = vmatprep.subr.mxu0 0.0
        %636 = vmatpush2.msra.mxu0 0.0
        %637 = vmatprep.subr.mxu0 0.0
        %638 = vmatpush2.msra.mxu0 0.0
        %639 = vmatprep.subr.mxu0 0.0
        %640 = vmatpush2.msra.mxu0 0.0
        %641 = vmatprep.subr.mxu0 0.0
        %642 = vmatpush2.msra.mxu0 0.0
        %643 = vmatprep.subr.mxu0 0.0
        %644 = vmatpush2.msra.mxu0 0.0
        %645 = vmatprep.subr.mxu0 0.0
        %646 = vmatpush2.msra.mxu0 0.0
        %647 = vmatprep.subr.mxu0 0.0
        %648 = vmatpush2.msra.mxu0 0.0
        %649 = vmatprep.subr.mxu0 0.0
        %650 = vmatpush2.msra.mxu0 0.0
        %651 = vmatprep.subr.mxu0 0.0
        %652 = vmatpush2.msra.mxu0 0.0
        %653 = vmatprep.subr.mxu0 0.0
        %654 = vmatpush2.msra.mxu0 0.0
        %655 = vmatprep.subr.mxu0 0.0
        %656 = vmatpush2.msra.mxu0 0.0
        %657 = vmatprep.subr.mxu0 0.0
        %658 = vmatpush2.msra.mxu0 0.0
        %659 = vmatprep.subr.mxu0 0.0
        %660 = vmatpush2.msra.mxu0 0.0
        %661 = vmatprep.subr.mxu0 0.0
        %662 = vmatpush2.msra.mxu0 0.0
        %663 = vmatprep.subr.mxu0 0.0
        %664 = vmatpush2.msra.mxu0 0.0
        %665 = vmatprep.subr.mxu0 0.0
        %666 = vmatpush2.msra.mxu0 0.0
        %667 = vmatprep.mubr.f32.mxu0 0.0
        %668 = vmatmul.mubr.f32.gmra.mxu0 %v580
        %v669 = vpop.f32.mrf.mxu0
        %v670 = vadd.f32 %v576, %v669
        %v671 = vpop.f32.mrf.mxu0
        %672 = vmatprep.mubr.f32.mxu0 0.0
        %673 = vmatmul.mubr.f32.gmra.mxu0 %v583
        %v674 = vpop.f32.mrf.mxu0
        %v675 = vadd.f32 %v576, %v674
        %v676 = vpop.f32.mrf.mxu0
        %677 = vmatprep.mubr.f32.mxu0 0.0
        %678 = vmatmul.mubr.f32.gmra.mxu0 %v586
        %v679 = vpop.f32.mrf.mxu0
        %v680 = vadd.f32 %v576, %v679
        %v681 = vpop.f32.mrf.mxu0
        %682 = vmatprep.mubr.f32.mxu0 0.0
        %683 = vmatmul.mubr.f32.gmra.mxu0 %v589
        %v684 = vpop.f32.mrf.mxu0
        %v685 = vadd.f32 %v576, %v684
        %v686 = vpop.f32.mrf.mxu0
        %687 = vmatprep.mubr.f32.mxu0 0.0
        %688 = vmatmul.mubr.f32.gmra.mxu0 %v592
        %v689 = vpop.f32.mrf.mxu0
        %v690 = vadd.f32 %v576, %v689
        %v691 = vpop.f32.mrf.mxu0
        %692 = vmatprep.mubr.f32.mxu0 0.0
        %693 = vmatmul.mubr.f32.gmra.mxu0 %v595
        %v694 = vpop.f32.mrf.mxu0
        %v695 = vadd.f32 %v576, %v694
        %v696 = vpop.f32.mrf.mxu0
        %697 = vmatprep.mubr.f32.mxu0 0.0
        %698 = vmatmul.mubr.f32.gmra.mxu0 %v598
        %v699 = vpop.f32.mrf.mxu0
        %v700 = vadd.f32 %v576, %v699
        %v701 = vpop.f32.mrf.mxu0
        %702 = vmatprep.mubr.f32.mxu0 0.0
        %703 = vmatmul.mubr.f32.gmra.mxu0 %v601
        %v704 = vpop.f32.mrf.mxu0
        %v705 = vadd.f32 %v576, %v704
        %v706 = vpop.f32.mrf.mxu0
        %707 = vdwg.mxu0
        %v708 = vmul.f32 %v670, 0.5
        %v709 = vmul.f32 %v675, 0.5
        %v710 = vmul.f32 %v680, 0.5
        %v711 = vmul.f32 %v685, 0.5
        %v712 = vmul.f32 %v690, 0.5
        %v713 = vmul.f32 %v695, 0.5
        %v714 = vmul.f32 %v700, 0.5
        %v715 = vmul.f32 %v705, 0.5
        %v716 = vmul.f32 %v670, %v670
        %v717 = vmul.f32 %v675, %v675
        %v718 = vmul.f32 %v680, %v680
        %v719 = vmul.f32 %v685, %v685
        %v720 = vmul.f32 %v690, %v690
        %v721 = vmul.f32 %v695, %v695
        %v722 = vmul.f32 %v700, %v700
        %v723 = vmul.f32 %v705, %v705
        %v724 = vmul.f32 %v716, %v670
        %v725 = vmul.f32 %v717, %v675
        %v726 = vmul.f32 %v718, %v680
        %v727 = vmul.f32 %v719, %v685
        %v728 = vmul.f32 %v720, %v690
        %v729 = vmul.f32 %v721, %v695
        %v730 = vmul.f32 %v722, %v700
        %v731 = vmul.f32 %v723, %v705
        %v732 = vmul.f32 %v724, 0.044715
        %v733 = vmul.f32 %v725, 0.044715
        %v734 = vmul.f32 %v726, 0.044715
        %v735 = vmul.f32 %v727, 0.044715
        %v736 = vmul.f32 %v728, 0.044715
        %v737 = vmul.f32 %v729, 0.044715
        %v738 = vmul.f32 %v730, 0.044715
        %v739 = vmul.f32 %v731, 0.044715
        %v740 = vadd.f32 %v670, %v732
        %v741 = vadd.f32 %v675, %v733
        %v742 = vadd.f32 %v680, %v734
        %v743 = vadd.f32 %v685, %v735
        %v744 = vadd.f32 %v690, %v736
        %v745 = vadd.f32 %v695, %v737
        %v746 = vadd.f32 %v700, %v738
        %v747 = vadd.f32 %v705, %v739
        %v748 = vmul.f32 %v740, 0.7978846
        %v749 = vmul.f32 %v741, 0.7978846
        %v750 = vmul.f32 %v742, 0.7978846
        %v751 = vmul.f32 %v743, 0.7978846
        %v752 = vmul.f32 %v744, 0.7978846
        %v753 = vmul.f32 %v745, 0.7978846
        %v754 = vmul.f32 %v746, 0.7978846
        %v755 = vmul.f32 %v747, 0.7978846
        %v756 = vtanh.pop %v748
        %v757 = vtanh.pop %v749
        %v758 = vtanh.pop %v750
        %v759 = vtanh.pop %v751
        %v760 = vtanh.pop %v752
        %v761 = vtanh.pop %v753
        %v762 = vtanh.pop %v754
        %v763 = vtanh.pop %v755
        %v764 = vadd.f32 %v756, 1.0
        %v765 = vadd.f32 %v757, 1.0
        %v766 = vadd.f32 %v758, 1.0
        %v767 = vadd.f32 %v759, 1.0
        %v768 = vadd.f32 %v760, 1.0
        %v769 = vadd.f32 %v761, 1.0
        %v770 = vadd.f32 %v762, 1.0
        %v771 = vadd.f32 %v763, 1.0
        %v772 = vmul.f32 %v708, %v764
        %v773 = vmul.f32 %v709, %v765
        %v774 = vmul.f32 %v710, %v766
        %v775 = vmul.f32 %v711, %v767
        %v776 = vmul.f32 %v712, %v768
        %v777 = vmul.f32 %v713, %v769
        %v778 = vmul.f32 %v714, %v770
        %v779 = vmul.f32 %v715, %v771
        %v780 = vld [vmem:[%s3] sm:$0xff]
        %v781 = vld [vmem:[%s3 + $0x8] sm:$0xff]
        %v782 = vld [vmem:[%s3 + $0x10] sm:$0xff]
        %v783 = vld [vmem:[%s3 + $0x18] sm:$0xff]
        %v784 = vld [vmem:[%s3 + $0x20] sm:$0xff]
        %v785 = vld [vmem:[%s3 + $0x28] sm:$0xff]
        %v786 = vld [vmem:[%s3 + $0x30] sm:$0xff]
        %v787 = vld [vmem:[%s3 + $0x38] sm:$0xff]
        %v788 = vld [vmem:[%s4] sm:$0x1]
        %v790 = vlaneseq
        %v791 = vshrl.u32 %v790, 7
        %v792 = vsub.s32 0, %v791
        %v793 = vrot.slane %v788, %v792
        %vm795 = vcmask 523264
        %v797 = vsel %vm795, %v772, 0
        %v800 = vsel %vm795, %v773, 0
        %v803 = vsel %vm795, %v774, 0
        %v806 = vsel %vm795, %v775, 0
        %v809 = vsel %vm795, %v776, 0
        %v812 = vsel %vm795, %v777, 0
        %v815 = vsel %vm795, %v778, 0
        %v818 = vsel %vm795, %v779, 0
        %820 = vmatprep.subr.mxu0 0.0
        %821 = vmatpush1.msra.mxu0 0.0
        %822 = vmatprep.subr.mxu0 0.0
        %823 = vmatpush1.msra.mxu0 0.0
        %824 = vmatprep.subr.mxu0 0.0
        %825 = vmatpush1.msra.mxu0 0.0
        %826 = vmatprep.subr.mxu0 0.0
        %827 = vmatpush1.msra.mxu0 0.0
        %828 = vmatprep.subr.mxu0 0.0
        %829 = vmatpush1.msra.mxu0 0.0
        %830 = vmatprep.subr.mxu0 0.0
        %831 = vmatpush1.msra.mxu0 0.0
        %832 = vmatprep.subr.mxu0 0.0
        %833 = vmatpush1.msra.mxu0 0.0
        %834 = vmatprep.subr.mxu0 0.0
        %835 = vmatpush1.msra.mxu0 0.0
        %836 = vmatprep.subr.mxu0 0.0
        %837 = vmatpush1.msra.mxu0 %v787
        %838 = vmatprep.subr.mxu0 0.0
        %839 = vmatpush1.msra.mxu0 %v786
        %840 = vmatprep.subr.mxu0 0.0
        %841 = vmatpush1.msra.mxu0 %v785
        %842 = vmatprep.subr.mxu0 0.0
        %843 = vmatpush1.msra.mxu0 %v784
        %844 = vmatprep.subr.mxu0 0.0
        %845 = vmatpush1.msra.mxu0 %v783
        %846 = vmatprep.subr.mxu0 0.0
        %847 = vmatpush1.msra.mxu0 %v782
        %848 = vmatprep.subr.mxu0 0.0
        %849 = vmatpush1.msra.mxu0 %v781
        %850 = vmatprep.subr.mxu0 0.0
        %851 = vmatpush1.msra.mxu0 %v780
        %852 = vmatprep.subr.mxu0 0.0
        %853 = vmatpush2.msra.mxu0 0.0
        %854 = vmatprep.subr.mxu0 0.0
        %855 = vmatpush2.msra.mxu0 0.0
        %856 = vmatprep.subr.mxu0 0.0
        %857 = vmatpush2.msra.mxu0 0.0
        %858 = vmatprep.subr.mxu0 0.0
        %859 = vmatpush2.msra.mxu0 0.0
        %860 = vmatprep.subr.mxu0 0.0
        %861 = vmatpush2.msra.mxu0 0.0
        %862 = vmatprep.subr.mxu0 0.0
        %863 = vmatpush2.msra.mxu0 0.0
        %864 = vmatprep.subr.mxu0 0.0
        %865 = vmatpush2.msra.mxu0 0.0
        %866 = vmatprep.subr.mxu0 0.0
        %867 = vmatpush2.msra.mxu0 0.0
        %868 = vmatprep.subr.mxu0 0.0
        %869 = vmatpush2.msra.mxu0 0.0
        %870 = vmatprep.subr.mxu0 0.0
        %871 = vmatpush2.msra.mxu0 0.0
        %872 = vmatprep.subr.mxu0 0.0
        %873 = vmatpush2.msra.mxu0 0.0
        %874 = vmatprep.subr.mxu0 0.0
        %875 = vmatpush2.msra.mxu0 0.0
        %876 = vmatprep.subr.mxu0 0.0
        %877 = vmatpush2.msra.mxu0 0.0
        %878 = vmatprep.subr.mxu0 0.0
        %879 = vmatpush2.msra.mxu0 0.0
        %880 = vmatprep.subr.mxu0 0.0
        %881 = vmatpush2.msra.mxu0 0.0
        %882 = vmatprep.subr.mxu0 0.0
        %883 = vmatpush2.msra.mxu0 0.0
        %884 = vmatprep.mubr.f32.mxu0 0.0
        %885 = vmatmul.mubr.f32.gmra.mxu0 %v797
        %v886 = vpop.f32.mrf.mxu0
        %v887 = vadd.f32 %v793, %v886
        %v888 = vpop.f32.mrf.mxu0
        %889 = vmatprep.mubr.f32.mxu0 0.0
        %890 = vmatmul.mubr.f32.gmra.mxu0 %v800
        %v891 = vpop.f32.mrf.mxu0
        %v892 = vadd.f32 %v793, %v891
        %v893 = vpop.f32.mrf.mxu0
        %894 = vmatprep.mubr.f32.mxu0 0.0
        %895 = vmatmul.mubr.f32.gmra.mxu0 %v803
        %v896 = vpop.f32.mrf.mxu0
        %v897 = vadd.f32 %v793, %v896
        %v898 = vpop.f32.mrf.mxu0
        %899 = vmatprep.mubr.f32.mxu0 0.0
        %900 = vmatmul.mubr.f32.gmra.mxu0 %v806
        %v901 = vpop.f32.mrf.mxu0
        %v902 = vadd.f32 %v793, %v901
        %v903 = vpop.f32.mrf.mxu0
        %904 = vmatprep.mubr.f32.mxu0 0.0
        %905 = vmatmul.mubr.f32.gmra.mxu0 %v809
        %v906 = vpop.f32.mrf.mxu0
        %v907 = vadd.f32 %v793, %v906
        %v908 = vpop.f32.mrf.mxu0
        %909 = vmatprep.mubr.f32.mxu0 0.0
        %910 = vmatmul.mubr.f32.gmra.mxu0 %v812
        %v911 = vpop.f32.mrf.mxu0
        %v912 = vadd.f32 %v793, %v911
        %v913 = vpop.f32.mrf.mxu0
        %914 = vmatprep.mubr.f32.mxu0 0.0
        %915 = vmatmul.mubr.f32.gmra.mxu0 %v815
        %v916 = vpop.f32.mrf.mxu0
        %v917 = vadd.f32 %v793, %v916
        %v918 = vpop.f32.mrf.mxu0
        %919 = vmatprep.mubr.f32.mxu0 0.0
        %920 = vmatmul.mubr.f32.gmra.mxu0 %v818
        %v921 = vpop.f32.mrf.mxu0
        %v922 = vadd.f32 %v793, %v921
        %v923 = vpop.f32.mrf.mxu0
        %924 = vdwg.mxu0
        %v925 = vsel %vm578, %v887, 0.0
        %926 = vadd.xlane.f32.xlu0 %v925
        %v927 = vpop.xlane.xlu0 %926
        %v928 = vsel %vm578, %v892, 0.0
        %929 = vadd.xlane.f32.xlu0 %v928
        %v930 = vpop.xlane.xlu0 %929
        %v931 = vsel %vm578, %v897, 0.0
        %932 = vadd.xlane.f32.xlu0 %v931
        %v933 = vpop.xlane.xlu0 %932
        %v934 = vsel %vm578, %v902, 0.0
        %935 = vadd.xlane.f32.xlu0 %v934
        %v936 = vpop.xlane.xlu0 %935
        %v937 = vsel %vm578, %v907, 0.0
        %938 = vadd.xlane.f32.xlu0 %v937
        %v939 = vpop.xlane.xlu0 %938
        %v940 = vsel %vm578, %v912, 0.0
        %941 = vadd.xlane.f32.xlu0 %v940
        %v942 = vpop.xlane.xlu0 %941
        %v943 = vsel %vm578, %v917, 0.0
        %944 = vadd.xlane.f32.xlu0 %v943
        %v945 = vpop.xlane.xlu0 %944
        %v946 = vsel %vm578, %v922, 0.0
        %947 = vadd.xlane.f32.xlu0 %v946
        %v948 = vpop.xlane.xlu0 %947
        %v949 = vrcp.pop 32.0
        %v950 = vmul.f32 %v927, %v949
        %v951 = vmul.f32 %v930, %v949
        %v952 = vmul.f32 %v933, %v949
        %v953 = vmul.f32 %v936, %v949
        %v954 = vmul.f32 %v939, %v949
        %v955 = vmul.f32 %v942, %v949
        %v956 = vmul.f32 %v945, %v949
        %v957 = vmul.f32 %v948, %v949
        %v958 = vsub.f32 %v887, %v950
        %v959 = vsub.f32 %v892, %v951
        %v960 = vsub.f32 %v897, %v952
        %v961 = vsub.f32 %v902, %v953
        %v962 = vsub.f32 %v907, %v954
        %v963 = vsub.f32 %v912, %v955
        %v964 = vsub.f32 %v917, %v956
        %v965 = vsub.f32 %v922, %v957
        %v966 = vmul.f32 %v958, %v958
        %v967 = vmul.f32 %v959, %v959
        %v968 = vmul.f32 %v960, %v960
        %v969 = vmul.f32 %v961, %v961
        %v970 = vmul.f32 %v962, %v962
        %v971 = vmul.f32 %v963, %v963
        %v972 = vmul.f32 %v964, %v964
        %v973 = vmul.f32 %v965, %v965
        %v974 = vsel %vm578, %v966, 0.0
        %975 = vadd.xlane.f32.xlu0 %v974
        %v976 = vpop.xlane.xlu0 %975
        %v977 = vsel %vm578, %v967, 0.0
        %978 = vadd.xlane.f32.xlu0 %v977
        %v979 = vpop.xlane.xlu0 %978
        %v980 = vsel %vm578, %v968, 0.0
        %981 = vadd.xlane.f32.xlu0 %v980
        %v982 = vpop.xlane.xlu0 %981
        %v983 = vsel %vm578, %v969, 0.0
        %984 = vadd.xlane.f32.xlu0 %v983
        %v985 = vpop.xlane.xlu0 %984
        %v986 = vsel %vm578, %v970, 0.0
        %987 = vadd.xlane.f32.xlu0 %v986
        %v988 = vpop.xlane.xlu0 %987
        %v989 = vsel %vm578, %v971, 0.0
        %990 = vadd.xlane.f32.xlu0 %v989
        %v991 = vpop.xlane.xlu0 %990
        %v992 = vsel %vm578, %v972, 0.0
        %993 = vadd.xlane.f32.xlu0 %v992
        %v994 = vpop.xlane.xlu0 %993
        %v995 = vsel %vm578, %v973, 0.0
        %996 = vadd.xlane.f32.xlu0 %v995
        %v997 = vpop.xlane.xlu0 %996
        %v998 = vmul.f32 %v976, %v949
        %v999 = vmul.f32 %v979, %v949
        %v1000 = vmul.f32 %v982, %v949
        %v1001 = vmul.f32 %v985, %v949
        %v1002 = vmul.f32 %v988, %v949
        %v1003 = vmul.f32 %v991, %v949
        %v1004 = vmul.f32 %v994, %v949
        %v1005 = vmul.f32 %v997, %v949
        %v1006 = vadd.f32 %v998, 1e-05
        %v1007 = vadd.f32 %v999, 1e-05
        %v1008 = vadd.f32 %v1000, 1e-05
        %v1009 = vadd.f32 %v1001, 1e-05
        %v1010 = vadd.f32 %v1002, 1e-05
        %v1011 = vadd.f32 %v1003, 1e-05
        %v1012 = vadd.f32 %v1004, 1e-05
        %v1013 = vadd.f32 %v1005, 1e-05
        %v1014 = vrsqrt.pop %v1006
        %v1015 = vrsqrt.pop %v1007
        %v1016 = vrsqrt.pop %v1008
        %v1017 = vrsqrt.pop %v1009
        %v1018 = vrsqrt.pop %v1010
        %v1019 = vrsqrt.pop %v1011
        %v1020 = vrsqrt.pop %v1012
        %v1021 = vrsqrt.pop %v1013
        %v1022 = vmul.f32 %v958, %v1014
        %v1023 = vmul.f32 %v959, %v1015
        %v1024 = vmul.f32 %v960, %v1016
        %v1025 = vmul.f32 %v961, %v1017
        %v1026 = vmul.f32 %v962, %v1018
        %v1027 = vmul.f32 %v963, %v1019
        %v1028 = vmul.f32 %v964, %v1020
        %v1029 = vmul.f32 %v965, %v1021
        %v1030 = vld [vmem:[%s5] sm:$0x1]
        %v1032 = vlaneseq
        %v1033 = vshrl.u32 %v1032, 7
        %v1034 = vsub.s32 0, %v1033
        %v1035 = vrot.slane %v1030, %v1034
        %v1037 = vmul.f32 %v1022, %v1035
        %v1038 = vmul.f32 %v1023, %v1035
        %v1039 = vmul.f32 %v1024, %v1035
        %v1040 = vmul.f32 %v1025, %v1035
        %v1041 = vmul.f32 %v1026, %v1035
        %v1042 = vmul.f32 %v1027, %v1035
        %v1043 = vmul.f32 %v1028, %v1035
        %v1044 = vmul.f32 %v1029, %v1035
        %v1045 = vld [vmem:[%s6] sm:$0x1]
        %v1047 = vlaneseq
        %v1048 = vshrl.u32 %v1047, 7
        %v1049 = vsub.s32 0, %v1048
        %v1050 = vrot.slane %v1045, %v1049
        %v1052 = vadd.f32 %v1037, %v1050
        %v1053 = vadd.f32 %v1038, %v1050
        %v1054 = vadd.f32 %v1039, %v1050
        %v1055 = vadd.f32 %v1040, %v1050
        %v1056 = vadd.f32 %v1041, %v1050
        %v1057 = vadd.f32 %v1042, %v1050
        %v1058 = vadd.f32 %v1043, %v1050
        %v1059 = vadd.f32 %v1044, %v1050
        %v1060 = vsel %vm578, %v1052, 0.0
        %v1061 = vsel %vm578, %v1053, 0.0
        %v1062 = vadd.f32 %v1060, %v1061
        %v1063 = vsel %vm578, %v1054, 0.0
        %v1064 = vadd.f32 %v1062, %v1063
        %v1065 = vsel %vm578, %v1055, 0.0
        %v1066 = vadd.f32 %v1064, %v1065
        %v1067 = vsel %vm578, %v1056, 0.0
        %v1068 = vadd.f32 %v1066, %v1067
        %v1069 = vsel %vm578, %v1057, 0.0
        %v1070 = vadd.f32 %v1068, %v1069
        %v1071 = vsel %vm578, %v1058, 0.0
        %v1072 = vadd.f32 %v1070, %v1071
        %v1073 = vsel %vm578, %v1059, 0.0
        %v1074 = vadd.f32 %v1072, %v1073
        %v1075 = vrcp.pop 8.0
        %v1076 = vmul.f32 %v1074, %v1075
        %v1077 = vld [vmem:[%s7] sm:$0xff]
        %v1078 = vld [vmem:[%s7 + $0x8] sm:$0xff]
        %v1079 = vld [vmem:[%s7 + $0x10] sm:$0xff]
        %v1080 = vld [vmem:[%s7 + $0x18] sm:$0xff]
        %v1081 = vld [vmem:[%s8] sm:$0x1]
        %v1083 = vlaneseq
        %v1084 = vshrl.u32 %v1083, 7
        %v1085 = vsub.s32 0, %v1084
        %v1086 = vrot.slane %v1081, %v1085
        %v1089 = vsel %vm578, %v1076, 0
        %1091 = vmatprep.subr.mxu0 0.0
        %1092 = vmatpush1.msra.mxu0 0.0
        %1093 = vmatprep.subr.mxu0 0.0
        %1094 = vmatpush1.msra.mxu0 0.0
        %1095 = vmatprep.subr.mxu0 0.0
        %1096 = vmatpush1.msra.mxu0 0.0
        %1097 = vmatprep.subr.mxu0 0.0
        %1098 = vmatpush1.msra.mxu0 0.0
        %1099 = vmatprep.subr.mxu0 0.0
        %1100 = vmatpush1.msra.mxu0 0.0
        %1101 = vmatprep.subr.mxu0 0.0
        %1102 = vmatpush1.msra.mxu0 0.0
        %1103 = vmatprep.subr.mxu0 0.0
        %1104 = vmatpush1.msra.mxu0 0.0
        %1105 = vmatprep.subr.mxu0 0.0
        %1106 = vmatpush1.msra.mxu0 0.0
        %1107 = vmatprep.subr.mxu0 0.0
        %1108 = vmatpush1.msra.mxu0 0.0
        %1109 = vmatprep.subr.mxu0 0.0
        %1110 = vmatpush1.msra.mxu0 0.0
        %1111 = vmatprep.subr.mxu0 0.0
        %1112 = vmatpush1.msra.mxu0 0.0
        %1113 = vmatprep.subr.mxu0 0.0
        %1114 = vmatpush1.msra.mxu0 0.0
        %1115 = vmatprep.subr.mxu0 0.0
        %1116 = vmatpush1.msra.mxu0 %v1080
        %1117 = vmatprep.subr.mxu0 0.0
        %1118 = vmatpush1.msra.mxu0 %v1079
        %1119 = vmatprep.subr.mxu0 0.0
        %1120 = vmatpush1.msra.mxu0 %v1078
        %1121 = vmatprep.subr.mxu0 0.0
        %1122 = vmatpush1.msra.mxu0 %v1077
        %1123 = vmatprep.subr.mxu0 0.0
        %1124 = vmatpush2.msra.mxu0 0.0
        %1125 = vmatprep.subr.mxu0 0.0
        %1126 = vmatpush2.msra.mxu0 0.0
        %1127 = vmatprep.subr.mxu0 0.0
        %1128 = vmatpush2.msra.mxu0 0.0
        %1129 = vmatprep.subr.mxu0 0.0
        %1130 = vmatpush2.msra.mxu0 0.0
        %1131 = vmatprep.subr.mxu0 0.0
        %1132 = vmatpush2.msra.mxu0 0.0
        %1133 = vmatprep.subr.mxu0 0.0
        %1134 = vmatpush2.msra.mxu0 0.0
        %1135 = vmatprep.subr.mxu0 0.0
        %1136 = vmatpush2.msra.mxu0 0.0
        %1137 = vmatprep.subr.mxu0 0.0
        %1138 = vmatpush2.msra.mxu0 0.0
        %1139 = vmatprep.subr.mxu0 0.0
        %1140 = vmatpush2.msra.mxu0 0.0
        %1141 = vmatprep.subr.mxu0 0.0
        %1142 = vmatpush2.msra.mxu0 0.0
        %1143 = vmatprep.subr.mxu0 0.0
        %1144 = vmatpush2.msra.mxu0 0.0
        %1145 = vmatprep.subr.mxu0 0.0
        %1146 = vmatpush2.msra.mxu0 0.0
        %1147 = vmatprep.subr.mxu0 0.0
        %1148 = vmatpush2.msra.mxu0 0.0
        %1149 = vmatprep.subr.mxu0 0.0
        %1150 = vmatpush2.msra.mxu0 0.0
        %1151 = vmatprep.subr.mxu0 0.0
        %1152 = vmatpush2.msra.mxu0 0.0
        %1153 = vmatprep.subr.mxu0 0.0
        %1154 = vmatpush2.msra.mxu0 0.0
        %1155 = vmatprep.mubr.f32.mxu0 0.0
        %1156 = vmatmul.mubr.f32.gmra.mxu0 %v1089
        %v1157 = vpop.f32.mrf.mxu0
        %v1158 = vadd.f32 %v1086, %v1157
        %v1159 = vpop.f32.mrf.mxu0
        %1160 = vdwg.mxu0
        %v1161 = vmul.f32 %v1158, 0.5
        %v1162 = vmul.f32 %v1158, %v1158
        %v1163 = vmul.f32 %v1162, %v1158
        %v1164 = vmul.f32 %v1163, 0.044715
        %v1165 = vadd.f32 %v1158, %v1164
        %v1166 = vmul.f32 %v1165, 0.7978846
        %v1167 = vtanh.pop %v1166
        %v1168 = vadd.f32 %v1167, 1.0
        %v1169 = vmul.f32 %v1161, %v1168
        %v1170 = vld [vmem:[%s11] sm:$0xff]
        %v1171 = vld [vmem:[%s12] sm:$0x1]
        %v1173 = vlaneseq
        %v1174 = vshrl.u32 %v1173, 7
        %v1175 = vsub.s32 0, %v1174
        %v1176 = vrot.slane %v1171, %v1175
        %vm1178 = vcmask 64512
        %v1180 = vsel %vm1178, %v1169, 0
        %1182 = vmatprep.subr.mxu0 0.0
        %1183 = vmatpush1.msra.mxu0 0.0
        %1184 = vmatprep.subr.mxu0 0.0
        %1185 = vmatpush1.msra.mxu0 0.0
        %1186 = vmatprep.subr.mxu0 0.0
        %1187 = vmatpush1.msra.mxu0 0.0
        %1188 = vmatprep.subr.mxu0 0.0
        %1189 = vmatpush1.msra.mxu0 0.0
        %1190 = vmatprep.subr.mxu0 0.0
        %1191 = vmatpush1.msra.mxu0 0.0
        %1192 = vmatprep.subr.mxu0 0.0
        %1193 = vmatpush1.msra.mxu0 0.0
        %1194 = vmatprep.subr.mxu0 0.0
        %1195 = vmatpush1.msra.mxu0 0.0
        %1196 = vmatprep.subr.mxu0 0.0
        %1197 = vmatpush1.msra.mxu0 0.0
        %1198 = vmatprep.subr.mxu0 0.0
        %1199 = vmatpush1.msra.mxu0 0.0
        %1200 = vmatprep.subr.mxu0 0.0
        %1201 = vmatpush1.msra.mxu0 0.0
        %1202 = vmatprep.subr.mxu0 0.0
        %1203 = vmatpush1.msra.mxu0 0.0
        %1204 = vmatprep.subr.mxu0 0.0
        %1205 = vmatpush1.msra.mxu0 0.0
        %1206 = vmatprep.subr.mxu0 0.0
        %1207 = vmatpush1.msra.mxu0 0.0
        %1208 = vmatprep.subr.mxu0 0.0
        %1209 = vmatpush1.msra.mxu0 0.0
        %1210 = vmatprep.subr.mxu0 0.0
        %1211 = vmatpush1.msra.mxu0 0.0
        %1212 = vmatprep.subr.mxu0 0.0
        %1213 = vmatpush1.msra.mxu0 %v1170
        %1214 = vmatprep.subr.mxu0 0.0
        %1215 = vmatpush2.msra.mxu0 0.0
        %1216 = vmatprep.subr.mxu0 0.0
        %1217 = vmatpush2.msra.mxu0 0.0
        %1218 = vmatprep.subr.mxu0 0.0
        %1219 = vmatpush2.msra.mxu0 0.0
        %1220 = vmatprep.subr.mxu0 0.0
        %1221 = vmatpush2.msra.mxu0 0.0
        %1222 = vmatprep.subr.mxu0 0.0
        %1223 = vmatpush2.msra.mxu0 0.0
        %1224 = vmatprep.subr.mxu0 0.0
        %1225 = vmatpush2.msra.mxu0 0.0
        %1226 = vmatprep.subr.mxu0 0.0
        %1227 = vmatpush2.msra.mxu0 0.0
        %1228 = vmatprep.subr.mxu0 0.0
        %1229 = vmatpush2.msra.mxu0 0.0
        %1230 = vmatprep.subr.mxu0 0.0
        %1231 = vmatpush2.msra.mxu0 0.0
        %1232 = vmatprep.subr.mxu0 0.0
        %1233 = vmatpush2.msra.mxu0 0.0
        %1234 = vmatprep.subr.mxu0 0.0
        %1235 = vmatpush2.msra.mxu0 0.0
        %1236 = vmatprep.subr.mxu0 0.0
        %1237 = vmatpush2.msra.mxu0 0.0
        %1238 = vmatprep.subr.mxu0 0.0
        %1239 = vmatpush2.msra.mxu0 0.0
        %1240 = vmatprep.subr.mxu0 0.0
        %1241 = vmatpush2.msra.mxu0 0.0
        %1242 = vmatprep.subr.mxu0 0.0
        %1243 = vmatpush2.msra.mxu0 0.0
        %1244 = vmatprep.subr.mxu0 0.0
        %1245 = vmatpush2.msra.mxu0 0.0
        %1246 = vmatprep.mubr.f32.mxu0 0.0
        %1247 = vmatmul.mubr.f32.gmra.mxu0 %v1180
        %v1248 = vpop.f32.mrf.mxu0
        %v1249 = vadd.f32 %v1176, %v1248
        %v1250 = vpop.f32.mrf.mxu0
        %1251 = vdwg.mxu0
        %v1252 = vxor.u32 %v1249, 2147483648
        %v1253 = vmul.f32 %v1252, 1.442695
        %v1254 = vpow.pop %v1253
        %v1255 = vadd.f32 %v1254, 1.0
        %v1256 = vrcp.pop %v1255
        %v1257 = vmul.f32 1.0, %v1256
        %v1258 = vld [vmem:[%s9] sm:$0xff]
        %v1259 = vld [vmem:[%s9 + $0x8] sm:$0xff]
        %v1260 = vld [vmem:[%s9 + $0x10] sm:$0xff]
        %v1261 = vld [vmem:[%s9 + $0x18] sm:$0xff]
        %v1262 = vld [vmem:[%s10] sm:$0x1]
        %v1264 = vlaneseq
        %v1265 = vshrl.u32 %v1264, 7
        %v1266 = vsub.s32 0, %v1265
        %v1267 = vrot.slane %v1262, %v1266
        %v1270 = vsel %vm578, %v1052, 0
        %v1273 = vsel %vm578, %v1053, 0
        %v1276 = vsel %vm578, %v1054, 0
        %v1279 = vsel %vm578, %v1055, 0
        %v1282 = vsel %vm578, %v1056, 0
        %v1285 = vsel %vm578, %v1057, 0
        %v1288 = vsel %vm578, %v1058, 0
        %v1291 = vsel %vm578, %v1059, 0
        %1293 = vmatprep.subr.mxu0 0.0
        %1294 = vmatpush1.msra.mxu0 0.0
        %1295 = vmatprep.subr.mxu0 0.0
        %1296 = vmatpush1.msra.mxu0 0.0
        %1297 = vmatprep.subr.mxu0 0.0
        %1298 = vmatpush1.msra.mxu0 0.0
        %1299 = vmatprep.subr.mxu0 0.0
        %1300 = vmatpush1.msra.mxu0 0.0
        %1301 = vmatprep.subr.mxu0 0.0
        %1302 = vmatpush1.msra.mxu0 0.0
        %1303 = vmatprep.subr.mxu0 0.0
        %1304 = vmatpush1.msra.mxu0 0.0
        %1305 = vmatprep.subr.mxu0 0.0
        %1306 = vmatpush1.msra.mxu0 0.0
        %1307 = vmatprep.subr.mxu0 0.0
        %1308 = vmatpush1.msra.mxu0 0.0
        %1309 = vmatprep.subr.mxu0 0.0
        %1310 = vmatpush1.msra.mxu0 0.0
        %1311 = vmatprep.subr.mxu0 0.0
        %1312 = vmatpush1.msra.mxu0 0.0
        %1313 = vmatprep.subr.mxu0 0.0
        %1314 = vmatpush1.msra.mxu0 0.0
        %1315 = vmatprep.subr.mxu0 0.0
        %1316 = vmatpush1.msra.mxu0 0.0
        %1317 = vmatprep.subr.mxu0 0.0
        %1318 = vmatpush1.msra.mxu0 %v1261
        %1319 = vmatprep.subr.mxu0 0.0
        %1320 = vmatpush1.msra.mxu0 %v1260
        %1321 = vmatprep.subr.mxu0 0.0
        %1322 = vmatpush1.msra.mxu0 %v1259
        %1323 = vmatprep.subr.mxu0 0.0
        %1324 = vmatpush1.msra.mxu0 %v1258
        %1325 = vmatprep.subr.mxu0 0.0
        %1326 = vmatpush2.msra.mxu0 0.0
        %1327 = vmatprep.subr.mxu0 0.0
        %1328 = vmatpush2.msra.mxu0 0.0
        %1329 = vmatprep.subr.mxu0 0.0
        %1330 = vmatpush2.msra.mxu0 0.0
        %1331 = vmatprep.subr.mxu0 0.0
        %1332 = vmatpush2.msra.mxu0 0.0
        %1333 = vmatprep.subr.mxu0 0.0
        %1334 = vmatpush2.msra.mxu0 0.0
        %1335 = vmatprep.subr.mxu0 0.0
        %1336 = vmatpush2.msra.mxu0 0.0
        %1337 = vmatprep.subr.mxu0 0.0
        %1338 = vmatpush2.msra.mxu0 0.0
        %1339 = vmatprep.subr.mxu0 0.0
        %1340 = vmatpush2.msra.mxu0 0.0
        %1341 = vmatprep.subr.mxu0 0.0
        %1342 = vmatpush2.msra.mxu0 0.0
        %1343 = vmatprep.subr.mxu0 0.0
        %1344 = vmatpush2.msra.mxu0 0.0
        %1345 = vmatprep.subr.mxu0 0.0
        %1346 = vmatpush2.msra.mxu0 0.0
        %1347 = vmatprep.subr.mxu0 0.0
        %1348 = vmatpush2.msra.mxu0 0.0
        %1349 = vmatprep.subr.mxu0 0.0
        %1350 = vmatpush2.msra.mxu0 0.0
        %1351 = vmatprep.subr.mxu0 0.0
        %1352 = vmatpush2.msra.mxu0 0.0
        %1353 = vmatprep.subr.mxu0 0.0
        %1354 = vmatpush2.msra.mxu0 0.0
        %1355 = vmatprep.subr.mxu0 0.0
        %1356 = vmatpush2.msra.mxu0 0.0
        %1357 = vmatprep.mubr.f32.mxu0 0.0
        %1358 = vmatmul.mubr.f32.gmra.mxu0 %v1270
        %v1359 = vpop.f32.mrf.mxu0
        %v1360 = vadd.f32 %v1267, %v1359
        %v1361 = vpop.f32.mrf.mxu0
        %1362 = vmatprep.mubr.f32.mxu0 0.0
        %1363 = vmatmul.mubr.f32.gmra.mxu0 %v1273
        %v1364 = vpop.f32.mrf.mxu0
        %v1365 = vadd.f32 %v1267, %v1364
        %v1366 = vpop.f32.mrf.mxu0
        %1367 = vmatprep.mubr.f32.mxu0 0.0
        %1368 = vmatmul.mubr.f32.gmra.mxu0 %v1276
        %v1369 = vpop.f32.mrf.mxu0
        %v1370 = vadd.f32 %v1267, %v1369
        %v1371 = vpop.f32.mrf.mxu0
        %1372 = vmatprep.mubr.f32.mxu0 0.0
        %1373 = vmatmul.mubr.f32.gmra.mxu0 %v1279
        %v1374 = vpop.f32.mrf.mxu0
        %v1375 = vadd.f32 %v1267, %v1374
        %v1376 = vpop.f32.mrf.mxu0
        %1377 = vmatprep.mubr.f32.mxu0 0.0
        %1378 = vmatmul.mubr.f32.gmra.mxu0 %v1282
        %v1379 = vpop.f32.mrf.mxu0
        %v1380 = vadd.f32 %v1267, %v1379
        %v1381 = vpop.f32.mrf.mxu0
        %1382 = vmatprep.mubr.f32.mxu0 0.0
        %1383 = vmatmul.mubr.f32.gmra.mxu0 %v1285
        %v1384 = vpop.f32.mrf.mxu0
        %v1385 = vadd.f32 %v1267, %v1384
        %v1386 = vpop.f32.mrf.mxu0
        %1387 = vmatprep.mubr.f32.mxu0 0.0
        %1388 = vmatmul.mubr.f32.gmra.mxu0 %v1288
        %v1389 = vpop.f32.mrf.mxu0
        %v1390 = vadd.f32 %v1267, %v1389
        %v1391 = vpop.f32.mrf.mxu0
        %1392 = vmatprep.mubr.f32.mxu0 0.0
        %1393 = vmatmul.mubr.f32.gmra.mxu0 %v1291
        %v1394 = vpop.f32.mrf.mxu0
        %v1395 = vadd.f32 %v1267, %v1394
        %v1396 = vpop.f32.mrf.mxu0
        %1397 = vdwg.mxu0
        %v1398 = vmul.f32 %v1360, 0.5
        %v1399 = vmul.f32 %v1365, 0.5
        %v1400 = vmul.f32 %v1370, 0.5
        %v1401 = vmul.f32 %v1375, 0.5
        %v1402 = vmul.f32 %v1380, 0.5
        %v1403 = vmul.f32 %v1385, 0.5
        %v1404 = vmul.f32 %v1390, 0.5
        %v1405 = vmul.f32 %v1395, 0.5
        %v1406 = vmul.f32 %v1360, %v1360
        %v1407 = vmul.f32 %v1365, %v1365
        %v1408 = vmul.f32 %v1370, %v1370
        %v1409 = vmul.f32 %v1375, %v1375
        %v1410 = vmul.f32 %v1380, %v1380
        %v1411 = vmul.f32 %v1385, %v1385
        %v1412 = vmul.f32 %v1390, %v1390
        %v1413 = vmul.f32 %v1395, %v1395
        %v1414 = vmul.f32 %v1406, %v1360
        %v1415 = vmul.f32 %v1407, %v1365
        %v1416 = vmul.f32 %v1408, %v1370
        %v1417 = vmul.f32 %v1409, %v1375
        %v1418 = vmul.f32 %v1410, %v1380
        %v1419 = vmul.f32 %v1411, %v1385
        %v1420 = vmul.f32 %v1412, %v1390
        %v1421 = vmul.f32 %v1413, %v1395
        %v1422 = vmul.f32 %v1414, 0.044715
        %v1423 = vmul.f32 %v1415, 0.044715
        %v1424 = vmul.f32 %v1416, 0.044715
        %v1425 = vmul.f32 %v1417, 0.044715
        %v1426 = vmul.f32 %v1418, 0.044715
        %v1427 = vmul.f32 %v1419, 0.044715
        %v1428 = vmul.f32 %v1420, 0.044715
        %v1429 = vmul.f32 %v1421, 0.044715
        %v1430 = vadd.f32 %v1360, %v1422
        %v1431 = vadd.f32 %v1365, %v1423
        %v1432 = vadd.f32 %v1370, %v1424
        %v1433 = vadd.f32 %v1375, %v1425
        %v1434 = vadd.f32 %v1380, %v1426
        %v1435 = vadd.f32 %v1385, %v1427
        %v1436 = vadd.f32 %v1390, %v1428
        %v1437 = vadd.f32 %v1395, %v1429
        %v1438 = vmul.f32 %v1430, 0.7978846
        %v1439 = vmul.f32 %v1431, 0.7978846
        %v1440 = vmul.f32 %v1432, 0.7978846
        %v1441 = vmul.f32 %v1433, 0.7978846
        %v1442 = vmul.f32 %v1434, 0.7978846
        %v1443 = vmul.f32 %v1435, 0.7978846
        %v1444 = vmul.f32 %v1436, 0.7978846
        %v1445 = vmul.f32 %v1437, 0.7978846
        %v1446 = vtanh.pop %v1438
        %v1447 = vtanh.pop %v1439
        %v1448 = vtanh.pop %v1440
        %v1449 = vtanh.pop %v1441
        %v1450 = vtanh.pop %v1442
        %v1451 = vtanh.pop %v1443
        %v1452 = vtanh.pop %v1444
        %v1453 = vtanh.pop %v1445
        %v1454 = vadd.f32 %v1446, 1.0
        %v1455 = vadd.f32 %v1447, 1.0
        %v1456 = vadd.f32 %v1448, 1.0
        %v1457 = vadd.f32 %v1449, 1.0
        %v1458 = vadd.f32 %v1450, 1.0
        %v1459 = vadd.f32 %v1451, 1.0
        %v1460 = vadd.f32 %v1452, 1.0
        %v1461 = vadd.f32 %v1453, 1.0
        %v1462 = vmul.f32 %v1398, %v1454
        %v1463 = vmul.f32 %v1399, %v1455
        %v1464 = vmul.f32 %v1400, %v1456
        %v1465 = vmul.f32 %v1401, %v1457
        %v1466 = vmul.f32 %v1402, %v1458
        %v1467 = vmul.f32 %v1403, %v1459
        %v1468 = vmul.f32 %v1404, %v1460
        %v1469 = vmul.f32 %v1405, %v1461
        %v1470 = vld [vmem:[%s13] sm:$0x1]
        %v1472 = vlaneseq
        %v1473 = vshrl.u32 %v1472, 7
        %v1474 = vsub.s32 0, %v1473
        %v1475 = vrot.slane %v1470, %v1474
        %v1477 = vmul.f32 %v1462, %v1475
        %v1478 = vmul.f32 %v1463, %v1475
        %v1479 = vmul.f32 %v1464, %v1475
        %v1480 = vmul.f32 %v1465, %v1475
        %v1481 = vmul.f32 %v1466, %v1475
        %v1482 = vmul.f32 %v1467, %v1475
        %v1483 = vmul.f32 %v1468, %v1475
        %v1484 = vmul.f32 %v1469, %v1475
        %v1485 = vsel %vm1178, %v1477, 0.0
        %1486 = vadd.xlane.f32.xlu0 %v1485
        %v1487 = vpop.xlane.xlu0 %1486
        %v1488 = vsel %vm1178, %v1478, 0.0
        %1489 = vadd.xlane.f32.xlu0 %v1488
        %v1490 = vpop.xlane.xlu0 %1489
        %v1491 = vsel %vm1178, %v1479, 0.0
        %1492 = vadd.xlane.f32.xlu0 %v1491
        %v1493 = vpop.xlane.xlu0 %1492
        %v1494 = vsel %vm1178, %v1480, 0.0
        %1495 = vadd.xlane.f32.xlu0 %v1494
        %v1496 = vpop.xlane.xlu0 %1495
        %v1497 = vsel %vm1178, %v1481, 0.0
        %1498 = vadd.xlane.f32.xlu0 %v1497
        %v1499 = vpop.xlane.xlu0 %1498
        %v1500 = vsel %vm1178, %v1482, 0.0
        %1501 = vadd.xlane.f32.xlu0 %v1500
        %v1502 = vpop.xlane.xlu0 %1501
        %v1503 = vsel %vm1178, %v1483, 0.0
        %1504 = vadd.xlane.f32.xlu0 %v1503
        %v1505 = vpop.xlane.xlu0 %1504
        %v1506 = vsel %vm1178, %v1484, 0.0
        %1507 = vadd.xlane.f32.xlu0 %v1506
        %v1508 = vpop.xlane.xlu0 %1507
        %v1509 = vld [vmem:[%s14] sm:$0x1]
        %v1511 = vlaneseq
        %v1512 = vshrl.u32 %v1511, 7
        %v1513 = vsub.s32 0, %v1512
        %v1514 = vrot.slane %v1509, %v1513
        %v1516 = vmul.f32 %v1169, %v1514
        %v1517 = vsel %vm1178, %v1516, 0.0
        %1518 = vadd.xlane.f32.xlu0 %v1517
        %v1519 = vpop.xlane.xlu0 %1518
        %v1520 = vadd.f32 %v1487, %v1519
        %v1521 = vadd.f32 %v1490, %v1519
        %v1522 = vadd.f32 %v1493, %v1519
        %v1523 = vadd.f32 %v1496, %v1519
        %v1524 = vadd.f32 %v1499, %v1519
        %v1525 = vadd.f32 %v1502, %v1519
        %v1526 = vadd.f32 %v1505, %v1519
        %v1527 = vadd.f32 %v1508, %v1519
        %v1528 = vld [vmem:[#allocation2] sm:$0x1]
        %v1530 = vlaneseq
        %v1531 = vshrl.u32 %v1530, 7
        %v1532 = vsub.s32 0, %v1531
        %v1533 = vrot.slane %v1528, %v1532
        %v1535 = vadd.f32 %v1520, %v1533
        %v1536 = vadd.f32 %v1521, %v1533
        %v1537 = vadd.f32 %v1522, %v1533
        %v1538 = vadd.f32 %v1523, %v1533
        %v1539 = vadd.f32 %v1524, %v1533
        %v1540 = vadd.f32 %v1525, %v1533
        %v1541 = vadd.f32 %v1526, %v1533
        %v1542 = vadd.f32 %v1527, %v1533
        %v1543 = vxor.u32 %v1535, 2147483648
        %v1544 = vxor.u32 %v1536, 2147483648
        %v1545 = vxor.u32 %v1537, 2147483648
        %v1546 = vxor.u32 %v1538, 2147483648
        %v1547 = vxor.u32 %v1539, 2147483648
        %v1548 = vxor.u32 %v1540, 2147483648
        %v1549 = vxor.u32 %v1541, 2147483648
        %v1550 = vxor.u32 %v1542, 2147483648
        %v1551 = vmul.f32 %v1543, 1.442695
        %v1552 = vpow.pop %v1551
        %v1553 = vmul.f32 %v1544, 1.442695
        %v1554 = vpow.pop %v1553
        %v1555 = vmul.f32 %v1545, 1.442695
        %v1556 = vpow.pop %v1555
        %v1557 = vmul.f32 %v1546, 1.442695
        %v1558 = vpow.pop %v1557
        %v1559 = vmul.f32 %v1547, 1.442695
        %v1560 = vpow.pop %v1559
        %v1561 = vmul.f32 %v1548, 1.442695
        %v1562 = vpow.pop %v1561
        %v1563 = vmul.f32 %v1549, 1.442695
        %v1564 = vpow.pop %v1563
        %v1565 = vmul.f32 %v1550, 1.442695
        %v1566 = vpow.pop %v1565
        %v1567 = vadd.f32 %v1552, 1.0
        %v1568 = vadd.f32 %v1554, 1.0
        %v1569 = vadd.f32 %v1556, 1.0
        %v1570 = vadd.f32 %v1558, 1.0
        %v1571 = vadd.f32 %v1560, 1.0
        %v1572 = vadd.f32 %v1562, 1.0
        %v1573 = vadd.f32 %v1564, 1.0
        %v1574 = vadd.f32 %v1566, 1.0
        %v1575 = vrcp.pop %v1567
        %v1576 = vmul.f32 1.0, %v1575
        %v1577 = vrcp.pop %v1568
        %v1578 = vmul.f32 1.0, %v1577
        %v1579 = vrcp.pop %v1569
        %v1580 = vmul.f32 1.0, %v1579
        %v1581 = vrcp.pop %v1570
        %v1582 = vmul.f32 1.0, %v1581
        %v1583 = vrcp.pop %v1571
        %v1584 = vmul.f32 1.0, %v1583
        %v1585 = vrcp.pop %v1572
        %v1586 = vmul.f32 1.0, %v1585
        %v1587 = vrcp.pop %v1573
        %v1588 = vmul.f32 1.0, %v1587
        %v1589 = vrcp.pop %v1574
        %v1590 = vmul.f32 1.0, %v1589
        %v1591 = vmul.f32 %v887, %v1257
        %v1592 = vmul.f32 %v892, %v1257
        %v1593 = vmul.f32 %v897, %v1257
        %v1594 = vmul.f32 %v902, %v1257
        %v1595 = vmul.f32 %v907, %v1257
        %v1596 = vmul.f32 %v912, %v1257
        %v1597 = vmul.f32 %v917, %v1257
        %v1598 = vmul.f32 %v922, %v1257
        %1600 = vset.pattern.permute.xlu0 0
        %1601 = vperm.xlu0 %1600, %v1576
        %v1602 = vpop.permute.xlu0 %1601
        %1605 = vset.pattern.permute.xlu0 0
        %1606 = vperm.xlu0 %1605, %v1578
        %v1607 = vpop.permute.xlu0 %1606
        %1610 = vset.pattern.permute.xlu0 0
        %1611 = vperm.xlu0 %1610, %v1580
        %v1612 = vpop.permute.xlu0 %1611
        %1615 = vset.pattern.permute.xlu0 0
        %1616 = vperm.xlu0 %1615, %v1582
        %v1617 = vpop.permute.xlu0 %1616
        %1620 = vset.pattern.permute.xlu0 0
        %1621 = vperm.xlu0 %1620, %v1584
        %v1622 = vpop.permute.xlu0 %1621
        %1625 = vset.pattern.permute.xlu0 0
        %1626 = vperm.xlu0 %1625, %v1586
        %v1627 = vpop.permute.xlu0 %1626
        %1630 = vset.pattern.permute.xlu0 0
        %1631 = vperm.xlu0 %1630, %v1588
        %v1632 = vpop.permute.xlu0 %1631
        %1635 = vset.pattern.permute.xlu0 0
        %1636 = vperm.xlu0 %1635, %v1590
        %v1637 = vpop.permute.xlu0 %1636
        %v1639 = vmul.f32 %v1591, %v1602
        %v1640 = vmul.f32 %v1592, %v1607
        %v1641 = vmul.f32 %v1593, %v1612
        %v1642 = vmul.f32 %v1594, %v1617
        %v1643 = vmul.f32 %v1595, %v1622
        %v1644 = vmul.f32 %v1596, %v1627
        %v1645 = vmul.f32 %v1597, %v1632
        %v1646 = vmul.f32 %v1598, %v1637
        %1647 = vst.msk [vmem:[%s558] sm:$0xff] %vm578, %v1639
        %1648 = vst.msk [vmem:[%s558 + $0x8] sm:$0xff] %vm578, %v1640
        %1649 = vst.msk [vmem:[%s558 + $0x10] sm:$0xff] %vm578, %v1641
        %1650 = vst.msk [vmem:[%s558 + $0x18] sm:$0xff] %vm578, %v1642
        %1651 = vst.msk [vmem:[%s558 + $0x20] sm:$0xff] %vm578, %v1643
        %1652 = vst.msk [vmem:[%s558 + $0x28] sm:$0xff] %vm578, %v1644
        %1653 = vst.msk [vmem:[%s558 + $0x30] sm:$0xff] %vm578, %v1645
        %1654 = vst.msk [vmem:[%s558 + $0x38] sm:$0xff] %vm578, %v1646
        %s1655 = sand.u32 %s400, 1
        %s1656 = scalar_lea.sflag [#allocation5], %s1655
        %s1657 = sand.u32 %s400, 1
        %s1658 = smul.addr %s1657, 64
        %s1659 = scalar_lea.vmem [#allocation6], %s1658
        // Predicated region
        $region89: #{bi_attn_mlp.1} parent=83 // pred_check
          %p1660 = pneg %p410
        $region90: #{bi_attn_mlp.1} parent=83 // pred_check_branch
          %1662 = sbr.rel (%p1660) target = $region92
        $region91: #{bi_attn_mlp.1} parent=83 // pred_region
          %s1664 = ssub.s32 1024, 1024
          %1665 = vsyncadd %s1656, %s1664
          %s1666 = smul.addr %s39, 16
          %s1667 = sadd.s32 %s40, %s1666
          %s1668 = smul.addr %s1667, 128
          %s1669 = scalar_lea.hbm %s16, %s1668
          %s1670 = sshll.u32 %s1659, 4
          %s1671 = int_to_ptr.vmem [resolvable:$true] %s1670
          %1676 = dma.vmem_to_hbm [thread:$0]  %s1671, 1024, %s1669, %s1656, 128, 256, 8
        $region92: #{bi_attn_mlp.1} parent=83 // pred_fallthru
          _
      $region84: #{bi_attn_mlp.1} parent=5 // pred_fallthru
        _
      %p1677 = scmp.le.s32.totalorder 2, %s30
      // Predicated region
      $region93: #{bi_attn_mlp.1} parent=5 // pred_check
        %p1678 = pneg %p1677
      $region94: #{bi_attn_mlp.1} parent=5 // pred_check_branch
        %1680 = sbr.rel (%p1678) target = $region96
      $region95: #{bi_attn_mlp.1} parent=5 // pred_region
        %s1681 = ssub.s32 %s30, 2
        // Predicated region
        $region97: #{bi_attn_mlp.1} parent=95 // pred_check
          %p1682 = pneg %p416
        $region98: #{bi_attn_mlp.1} parent=95 // pred_check_branch
          %1684 = sbr.rel (%p1682) target = $region100
        $region99: #{bi_attn_mlp.1} parent=95 // pred_region
          %s1685 = sand.u32 %s401, 1
          %s1686 = scalar_lea.sflag [#allocation5], %s1685
          %s1687 = sand.u32 %s401, 1
          %s1688 = smul.addr %s1687, 64
          %s1689 = scalar_lea.vmem [#allocation6], %s1688
          %1690 = dma.done %s1686, 1024
        $region100: #{bi_attn_mlp.1} parent=95 // pred_fallthru
          _
      $region96: #{bi_attn_mlp.1} parent=5 // pred_fallthru
        _
    $region6: #{bi_attn_mlp.1} parent=1 // loop_footer
      %s34 = sadd.s32 1, %s30
    $region7: #{bi_attn_mlp.1} parent=1 // loop_footer_branch
      %29 = sbr.rel target = $region3
    $region8: #{bi_attn_mlp.1} parent=1 // loop_exit
      _
    %1691 = vsyncpa [#allocation4], 1
    %s1692 = scalar_lea.sflag [#allocation4], 1
    %1693 = vsyncpa %s1692, 1
    %1694 = vsyncpa [#allocation5], 1
    %s1695 = scalar_lea.sflag [#allocation5], 1
    %1696 = vsyncpa %s1695, 1

</llo_original>
